<compile_context>
chip_gen: v7x
topology: tpu7x:2x2x1
jax: 0.10.0
libtpu: 0.0.40
codegen_flags: <defaults>
</compile_context>

<pallas_src>
import functools

import jax
import jax.numpy as jnp
from jax.experimental import pallas as pl
from jax.experimental.pallas import tpu as pltpu


def attention_kernel(hb_ref, enc_ref, we_ref, v_ref, out_ref, *, s_valid):
    # hb_ref : (Bb, 1, Hd)   f32   precomputed  hidden @ Wh^T + b  (per batch tile)
    # enc_ref: (Bb, Sp, E)         encoder outputs tile (S padded to lane multiple)
    # we_ref : (E, Hd)             encoder-side weight columns (pre-transposed)
    # v_ref  : (1, Hd)       f32   scoring vector (row layout)
    # out_ref: (Bb, Sp)      f32   lane-dense softmax attention weights
    Bb, Sp, E = enc_ref.shape
    Hd = we_ref.shape[1]

    # One MXU-shaped 2-D matmul over all Bb*Sp rows of this tile (Sp % 8 == 0, so the
    # leading-dim merge/split reshapes stay on (8,128) tile boundaries).
    enc2d = enc_ref[...].reshape(Bb * Sp, E)
    e_proj = jnp.dot(enc2d, we_ref[...], preferred_element_type=jnp.float32)
    e_proj = e_proj.reshape(Bb, Sp, Hd)

    # Broadcast of the per-batch hidden projection replaces PyTorch's
    # hidden.unsqueeze(1).repeat(1, src_len, 1).
    energy = jnp.tanh(e_proj + hb_ref[...])                      # (Bb, Sp, Hd) f32

    # Score = energy . v  as a VPU multiply + lane reduce (avoids an N=1 MXU matmul)
    # and lands directly in the lane-dense (Bb, Sp) layout.
    v_row = v_ref[...].reshape(1, 1, Hd)
    score = jnp.sum(energy * v_row, axis=-1)                     # (Bb, Sp)

    # Mask padded sequence positions so the softmax normalization is exact.
    if s_valid < Sp:
        col = jax.lax.broadcasted_iota(jnp.int32, (Bb, Sp), 1)
        score = jnp.where(col < s_valid, score, -jnp.inf)

    # Numerically-stable softmax over the source sequence (lane axis).
    m = jnp.max(score, axis=-1, keepdims=True)
    p = jnp.exp(score - m)
    denom = jnp.sum(p, axis=-1, keepdims=True)
    out_ref[...] = (p * pl.reciprocal(denom, approx=True)).astype(out_ref.dtype)


def attention_forward(hidden, encoder_outputs, W_attn, b_attn, v_w, *, block_b=8):
    """Additive attention forward.

    hidden:          (B, Hd)          decoder hidden state
    encoder_outputs: (B, S, 2*He)     batch-first, feature-last
    W_attn:          (Hd, Hd + 2*He)  attn.weight (PyTorch out x in layout)
    b_attn:          (Hd,)            attn.bias
    v_w:             (1, Hd)          v.weight
    returns: (B, S) float32 softmax attention weights.
    """
    B, S, enc2 = encoder_outputs.shape
    Hd = hidden.shape[-1]

    # ---- host-side (XLA) preprocessing -------------------------------------
    # cat order in the PyTorch forward is (hidden, encoder_outputs) along dim=2,
    # so the first Hd columns of W_attn act on `hidden`, the rest on encoder outputs.
    WhT = W_attn[:, :Hd].T.astype(jnp.float32)                            # (Hd, Hd)
    # Hoisted hidden projection + bias: a single tiny (B, Hd) matmul here instead of
    # an M=1 MXU push on every grid step inside the kernel.
    hb = hidden.astype(jnp.float32) @ WhT + b_attn.astype(jnp.float32)    # (B, Hd)

    # Keep the big operands in the caller's dtype (bf16-friendly on v6e/v7x);
    # the in-kernel matmul accumulates in f32 via preferred_element_type.
    cdt = encoder_outputs.dtype
    WeT = W_attn[:, Hd:].T.astype(cdt)                                    # (enc2, Hd)
    v_row = v_w.reshape(1, Hd).astype(jnp.float32)                        # (1, Hd)

    # ---- tiling -------------------------------------------------------------
    # Batch tile: a multiple of 8 keeps the (Bb, Sp) output block (8, 128)-aligned.
    # With the default of 8, any B > 8 yields >= 2 parallel grid steps so both
    # v7x TensorCores get work. Sequence is padded to a multiple of 128 so the
    # output stores are full-lane (unmasked); padded scores are masked in-kernel.
    block_b = max(8, (min(block_b, B + 7) // 8) * 8)
    nb = pl.cdiv(B, block_b)
    Bp = nb * block_b
    Sp = pl.cdiv(S, 128) * 128

    enc_p = jnp.pad(encoder_outputs, ((0, Bp - B), (0, Sp - S), (0, 0)))
    hb_p = jnp.pad(hb, ((0, Bp - B), (0, 0))).reshape(Bp, 1, Hd)

    # NOTE: for production-sized Hd/enc2, consider pipeline_mode=pl.Buffered(1) on the
    # constant-index weight specs (WeT, v) to avoid double-buffering them in VMEM, and
    # budget 2 * block_b * Sp * enc2 * dtype against v7x's ~32 MiB scoped VMEM.
    out = pl.pallas_call(
        functools.partial(attention_kernel, s_valid=S),
        out_shape=jax.ShapeDtypeStruct((Bp, Sp), jnp.float32),
        grid_spec=pltpu.PrefetchScalarGridSpec(
            num_scalar_prefetch=0,
            grid=(nb,),
            in_specs=[
                pl.BlockSpec((block_b, 1, Hd), lambda i: (i, 0, 0)),    # hb   (per tile)
                pl.BlockSpec((block_b, Sp, enc2), lambda i: (i, 0, 0)), # enc  (per tile)
                pl.BlockSpec((enc2, Hd), lambda i: (0, 0)),             # WeT  (shared)
                pl.BlockSpec((1, Hd), lambda i: (0, 0)),                # v    (shared)
            ],
            out_specs=pl.BlockSpec((block_b, Sp), lambda i: (i, 0)),    # lane-dense
        ),
        compiler_params=pltpu.CompilerParams(
            dimension_semantics=("parallel",)),
    )(hb_p, enc_p, WeT, v_row)

    return out[:B, :S]


if __name__ == "__main__":
    B, S = 2, 8
    enc_hid, dec_hid = 16, 32
    enc2 = 2 * enc_hid
    in_features = enc2 + dec_hid

    key = jax.random.PRNGKey(0)
    k1, k2, k3, k4, k5 = jax.random.split(key, 5)

    # deterministic parameter init (PyTorch Linear-style uniform bounds)
    ba = 1.0 / (in_features ** 0.5)
    bv = 1.0 / (dec_hid ** 0.5)
    W_attn = jax.random.uniform(k1, (dec_hid, in_features), jnp.float32, -ba, ba)
    b_attn = jax.random.uniform(k2, (dec_hid,), jnp.float32, -ba, ba)
    v_w = jax.random.uniform(k3, (1, dec_hid), jnp.float32, -bv, bv)

    hidden = jax.random.normal(k4, (B, dec_hid), jnp.float32)
    encoder_outputs = jax.random.normal(k5, (B, S, enc2), jnp.float32)

    out = attention_forward(hidden, encoder_outputs, W_attn, b_attn, v_w)
    out = jax.block_until_ready(out)

    # pure-JAX reference of the PyTorch forward pass
    hid_rep = jnp.repeat(hidden[:, None, :], S, axis=1)
    cat = jnp.concatenate([hid_rep, encoder_outputs], axis=2)
    energy = jnp.tanh(cat @ W_attn.T + b_attn)
    ref = jax.nn.softmax((energy @ v_w.T)[..., 0], axis=1)

    assert out.shape == (B, S)
    # tolerance accounts for the approximate EUP reciprocal used for the softmax
    # normalization (structural bugs would show up as O(0.1) errors).
    assert bool(jnp.allclose(out, ref, atol=5e-3, rtol=5e-3)), "mismatch vs reference"
    print("KERNEL_OK")
</pallas_src>

<mosaic_0001>
module attributes {stable_mosaic.version = 11 : i64} {
  func.func @attention_kernel(%arg0: i32, %arg1: memref<8x1x32xf32, #tpu.memory_space<vmem>>, %arg2: memref<8x128x32xf32, #tpu.memory_space<vmem>>, %arg3: memref<32x32xf32, #tpu.memory_space<vmem>>, %arg4: memref<1x32xf32, #tpu.memory_space<vmem>>, %arg5: memref<8x128xf32, #tpu.memory_space<vmem>>) attributes {dimension_semantics = [#tpu.dimension_semantics<parallel>], iteration_bounds = array<i64: 1>, scalar_prefetch = 0 : i64, scratch_operands = 0 : i64, tpu.core_type = #tpu.core_type<tc>, window_params = [{transform_indices = @transform_0, window_bounds = array<i64: 8, 1, 32>}, {transform_indices = @transform_1, window_bounds = array<i64: 8, 128, 32>}, {pipeline_mode = #tpu.pipeline_mode<synchronous>, transform_indices = @transform_2, window_bounds = array<i64: 32, 32>}, {pipeline_mode = #tpu.pipeline_mode<synchronous>, transform_indices = @transform_3, window_bounds = array<i64: 1, 32>}, {transform_indices = @transform_4, window_bounds = array<i64: 8, 128>}]} {
    %c0 = arith.constant 0 : index
    %c0_0 = arith.constant 0 : index
    %c0_1 = arith.constant 0 : index
    %0 = vector.load %arg2[%c0, %c0_0, %c0_1] : memref<8x128x32xf32, #tpu.memory_space<vmem>>, vector<8x128x32xf32>
    %1 = vector.shape_cast %0 : vector<8x128x32xf32> to vector<1024x32xf32>
    %c0_2 = arith.constant 0 : index
    %c0_3 = arith.constant 0 : index
    %2 = vector.load %arg3[%c0_2, %c0_3] : memref<32x32xf32, #tpu.memory_space<vmem>>, vector<32x32xf32>
    %cst = arith.constant dense<0.000000e+00> : vector<1024x32xf32>
    %3 = tpu.matmul %1, %2, %cst {dimension_numbers = #tpu.dot_dimension_numbers<[1], [0], [0], [1], [0, 0, 1, 1], [], []>} : vector<1024x32xf32>, vector<32x32xf32>, vector<1024x32xf32> -> vector<1024x32xf32>
    %4 = vector.shape_cast %3 : vector<1024x32xf32> to vector<8x128x32xf32>
    %c0_4 = arith.constant 0 : index
    %c0_5 = arith.constant 0 : index
    %c0_6 = arith.constant 0 : index
    %5 = vector.load %arg1[%c0_4, %c0_5, %c0_6] : memref<8x1x32xf32, #tpu.memory_space<vmem>>, vector<8x1x32xf32>
    %6 = vector.broadcast %5 : vector<8x1x32xf32> to vector<8x128x32xf32>
    %7 = arith.addf %4, %6 : vector<8x128x32xf32>
    %8 = math.tanh %7 : vector<8x128x32xf32>
    %c0_7 = arith.constant 0 : index
    %c0_8 = arith.constant 0 : index
    %9 = vector.load %arg4[%c0_7, %c0_8] : memref<1x32xf32, #tpu.memory_space<vmem>>, vector<1x32xf32>
    %10 = vector.shape_cast %9 : vector<1x32xf32> to vector<1x1x32xf32>
    %11 = vector.broadcast %10 : vector<1x1x32xf32> to vector<8x128x32xf32>
    %12 = arith.mulf %8, %11 : vector<8x128x32xf32>
    %cst_9 = arith.constant dense<0.000000e+00> : vector<8x128xf32>
    %13 = vector.multi_reduction <add>, %12, %cst_9 [2] : vector<8x128x32xf32> to vector<8x128xf32>
    %14 = tpu.iota {dimensions = array<i32: 1>} : vector<8x128xi32>
    %c8_i32 = arith.constant 8 : i32
    %15 = vector.broadcast %c8_i32 : i32 to vector<8x128xi32>
    %16 = arith.cmpi slt, %14, %15 : vector<8x128xi32>
    %cst_10 = arith.constant 0xFF800000 : f32
    %17 = vector.broadcast %cst_10 : f32 to vector<8x128xf32>
    %18 = arith.select %16, %13, %17 : vector<8x128xi1>, vector<8x128xf32>
    %cst_11 = arith.constant dense<0xFF800000> : vector<8xf32>
    %19 = vector.multi_reduction <maximumf>, %18, %cst_11 [1] : vector<8x128xf32> to vector<8xf32>
    %20 = vector.shape_cast %19 : vector<8xf32> to vector<8x1xf32>
    %21 = vector.broadcast %20 : vector<8x1xf32> to vector<8x128xf32>
    %22 = arith.subf %18, %21 : vector<8x128xf32>
    %23 = math.exp %22 : vector<8x128xf32>
    %cst_12 = arith.constant dense<0.000000e+00> : vector<8xf32>
    %24 = vector.multi_reduction <add>, %23, %cst_12 [1] : vector<8x128xf32> to vector<8xf32>
    %25 = vector.shape_cast %24 : vector<8xf32> to vector<8x1xf32>
    %26 = tpu.reciprocal %25 {approx = true} : vector<8x1xf32> -> vector<8x1xf32>
    %27 = vector.broadcast %26 : vector<8x1xf32> to vector<8x128xf32>
    %28 = arith.mulf %23, %27 : vector<8x128xf32>
    %c0_13 = arith.constant 0 : index
    %c0_14 = arith.constant 0 : index
    %29 = vector.load %arg5[%c0_13, %c0_14] : memref<8x128xf32, #tpu.memory_space<vmem>>, vector<8x128xf32>
    tpu.vector_store %arg5[%c0_13, %c0_14], %28 {strides = array<i32>} : memref<8x128xf32, #tpu.memory_space<vmem>>, vector<8x128xf32>,
    return
  }
  func.func @transform_0(%arg0: i32) -> (i32, i32, i32) {
    %c0_i32 = arith.constant 0 : i32
    %c0_i32_0 = arith.constant 0 : i32
    %c0_i32_1 = arith.constant 0 : i32
    return %arg0, %c0_i32, %c0_i32_0 : i32, i32, i32
  }
  func.func @transform_1(%arg0: i32) -> (i32, i32, i32) {
    %c0_i32 = arith.constant 0 : i32
    %c0_i32_0 = arith.constant 0 : i32
    %c0_i32_1 = arith.constant 0 : i32
    return %arg0, %c0_i32, %c0_i32_0 : i32, i32, i32
  }
  func.func @transform_2(%arg0: i32) -> (i32, i32) {
    %c0_i32 = arith.constant 0 : i32
    %c0_i32_0 = arith.constant 0 : i32
    %c0_i32_1 = arith.constant 0 : i32
    return %c0_i32, %c0_i32_0 : i32, i32
  }
  func.func @transform_3(%arg0: i32) -> (i32, i32) {
    %c0_i32 = arith.constant 0 : i32
    %c0_i32_0 = arith.constant 0 : i32
    %c0_i32_1 = arith.constant 0 : i32
    return %c0_i32, %c0_i32_0 : i32, i32
  }
  func.func @transform_4(%arg0: i32) -> (i32, i32) {
    %c0_i32 = arith.constant 0 : i32
    %c0_i32_0 = arith.constant 0 : i32
    return %arg0, %c0_i32 : i32, i32
  }
}

</mosaic_0001>

<llo_original>
// kernel: tpu_custom_call.1
$region0: #{tpu_custom_call.1}
  #allocation0 [shape = 'u32[]', space=smem, size = 0x4, offset = 0x4, fixed_abs, tag = 'smem constant byte address 0x4 - core index']
  #allocation1 [shape = 'u32[144,128]{1,0:T(1,128)}', space=vmem, size = 0x12000, scoped, tag = 'internal scratch']
  %s0 = inlined_call_operand.vmem [shape: f32[8,1,32], index: 0, kind: input, shape index: {}]
  %s1 = inlined_call_operand.vmem [shape: f32[8,128,32], index: 1, kind: input, shape index: {}]
  %s2 = inlined_call_operand.vmem [shape: f32[32,32], index: 2, kind: input, shape index: {}]
  %s3 = inlined_call_operand.vmem [shape: f32[1,32], index: 3, kind: input, shape index: {}]
  %s4 = inlined_call_operand.hbm [shape: f32[8,128], index: 4, kind: output, shape index: {}]
  %s5 = sld [smem:[#allocation0]]
  $region26: #{tpu_custom_call.1} parent=0
    _
  %s7 = ssub.s32 1, %s5
  %s8 = scalar_select 0, %s7, %s5
  $region1: #{tpu_custom_call.1} parent=0
    #allocation2 [shape = 'u8[4096]{0}', space=vmem, size = 0x1000, scoped, tag = 'output window, operand 0, single buffered']
    #allocation3 [shape = 's32[1]{0}', space=sflag, size = 0x4, scoped, tag = 'scoped memory for tpu_custom_call.1']
    %9 = vsyncpa [#allocation3], 0
    // Predicated region
    $region2: #{tpu_custom_call.1} parent=1 // pred_check
      _
    $region3: #{tpu_custom_call.1} parent=1 // pred_check_branch
      %11 = sbr.rel (0) target = $region5
    $region4: #{tpu_custom_call.1} parent=1 // pred_region
      _
    $region5: #{tpu_custom_call.1} parent=1 // pred_fallthru
      _
    // Predicated region
    $region6: #{tpu_custom_call.1} parent=1 // pred_check
      _
    $region7: #{tpu_custom_call.1} parent=1 // pred_check_branch
      %13 = sbr.rel (0) target = $region9
    $region8: #{tpu_custom_call.1} parent=1 // pred_region
      _
    $region9: #{tpu_custom_call.1} parent=1 // pred_fallthru
      _
    // Predicated region
    $region10: #{tpu_custom_call.1} parent=1 // pred_check
      _
    $region11: #{tpu_custom_call.1} parent=1 // pred_check_branch
      %15 = sbr.rel (0) target = $region13
    $region12: #{tpu_custom_call.1} parent=1 // pred_region
      _
    $region13: #{tpu_custom_call.1} parent=1 // pred_fallthru
      _
    // Predicated region
    $region14: #{tpu_custom_call.1} parent=1 // pred_check
      _
    $region15: #{tpu_custom_call.1} parent=1 // pred_check_branch
      %17 = sbr.rel (0) target = $region17
    $region16: #{tpu_custom_call.1} parent=1 // pred_region
      _
    $region17: #{tpu_custom_call.1} parent=1 // pred_fallthru
      _
    %v18 = vld [vmem:[%s1] sm:$0xff]
    %v19 = vld [vmem:[%s1 + $0x8] sm:$0xff]
    %v20 = vld [vmem:[%s1 + $0x10] sm:$0xff]
    %v21 = vld [vmem:[%s1 + $0x18] sm:$0xff]
    %v22 = vld [vmem:[%s1 + $0x20] sm:$0xff]
    %v23 = vld [vmem:[%s1 + $0x28] sm:$0xff]
    %v24 = vld [vmem:[%s1 + $0x30] sm:$0xff]
    %v25 = vld [vmem:[%s1 + $0x38] sm:$0xff]
    %v26 = vld [vmem:[%s1 + $0x40] sm:$0xff]
    %v27 = vld [vmem:[%s1 + $0x48] sm:$0xff]
    %v28 = vld [vmem:[%s1 + $0x50] sm:$0xff]
    %v29 = vld [vmem:[%s1 + $0x58] sm:$0xff]
    %v30 = vld [vmem:[%s1 + $0x60] sm:$0xff]
    %v31 = vld [vmem:[%s1 + $0x68] sm:$0xff]
    %v32 = vld [vmem:[%s1 + $0x70] sm:$0xff]
    %v33 = vld [vmem:[%s1 + $0x78] sm:$0xff]
    %v34 = vld [vmem:[%s1 + $0x80] sm:$0xff]
    %v35 = vld [vmem:[%s1 + $0x88] sm:$0xff]
    %v36 = vld [vmem:[%s1 + $0x90] sm:$0xff]
    %v37 = vld [vmem:[%s1 + $0x98] sm:$0xff]
    %v38 = vld [vmem:[%s1 + $0xa0] sm:$0xff]
    %v39 = vld [vmem:[%s1 + $0xa8] sm:$0xff]
    %v40 = vld [vmem:[%s1 + $0xb0] sm:$0xff]
    %v41 = vld [vmem:[%s1 + $0xb8] sm:$0xff]
    %v42 = vld [vmem:[%s1 + $0xc0] sm:$0xff]
    %v43 = vld [vmem:[%s1 + $0xc8] sm:$0xff]
    %v44 = vld [vmem:[%s1 + $0xd0] sm:$0xff]
    %v45 = vld [vmem:[%s1 + $0xd8] sm:$0xff]
    %v46 = vld [vmem:[%s1 + $0xe0] sm:$0xff]
    %v47 = vld [vmem:[%s1 + $0xe8] sm:$0xff]
    %v48 = vld [vmem:[%s1 + $0xf0] sm:$0xff]
    %v49 = vld [vmem:[%s1 + $0xf8] sm:$0xff]
    %v50 = vld [vmem:[%s1 + $0x100] sm:$0xff]
    %v51 = vld [vmem:[%s1 + $0x108] sm:$0xff]
    %v52 = vld [vmem:[%s1 + $0x110] sm:$0xff]
    %v53 = vld [vmem:[%s1 + $0x118] sm:$0xff]
    %v54 = vld [vmem:[%s1 + $0x120] sm:$0xff]
    %v55 = vld [vmem:[%s1 + $0x128] sm:$0xff]
    %v56 = vld [vmem:[%s1 + $0x130] sm:$0xff]
    %v57 = vld [vmem:[%s1 + $0x138] sm:$0xff]
    %v58 = vld [vmem:[%s1 + $0x140] sm:$0xff]
    %v59 = vld [vmem:[%s1 + $0x148] sm:$0xff]
    %v60 = vld [vmem:[%s1 + $0x150] sm:$0xff]
    %v61 = vld [vmem:[%s1 + $0x158] sm:$0xff]
    %v62 = vld [vmem:[%s1 + $0x160] sm:$0xff]
    %v63 = vld [vmem:[%s1 + $0x168] sm:$0xff]
    %v64 = vld [vmem:[%s1 + $0x170] sm:$0xff]
    %v65 = vld [vmem:[%s1 + $0x178] sm:$0xff]
    %v66 = vld [vmem:[%s1 + $0x180] sm:$0xff]
    %v67 = vld [vmem:[%s1 + $0x188] sm:$0xff]
    %v68 = vld [vmem:[%s1 + $0x190] sm:$0xff]
    %v69 = vld [vmem:[%s1 + $0x198] sm:$0xff]
    %v70 = vld [vmem:[%s1 + $0x1a0] sm:$0xff]
    %v71 = vld [vmem:[%s1 + $0x1a8] sm:$0xff]
    %v72 = vld [vmem:[%s1 + $0x1b0] sm:$0xff]
    %v73 = vld [vmem:[%s1 + $0x1b8] sm:$0xff]
    %v74 = vld [vmem:[%s1 + $0x1c0] sm:$0xff]
    %v75 = vld [vmem:[%s1 + $0x1c8] sm:$0xff]
    %v76 = vld [vmem:[%s1 + $0x1d0] sm:$0xff]
    %v77 = vld [vmem:[%s1 + $0x1d8] sm:$0xff]
    %v78 = vld [vmem:[%s1 + $0x1e0] sm:$0xff]
    %v79 = vld [vmem:[%s1 + $0x1e8] sm:$0xff]
    %v80 = vld [vmem:[%s1 + $0x1f0] sm:$0xff]
    %v81 = vld [vmem:[%s1 + $0x1f8] sm:$0xff]
    %v82 = vld [vmem:[%s1 + $0x200] sm:$0xff]
    %v83 = vld [vmem:[%s1 + $0x208] sm:$0xff]
    %v84 = vld [vmem:[%s1 + $0x210] sm:$0xff]
    %v85 = vld [vmem:[%s1 + $0x218] sm:$0xff]
    %v86 = vld [vmem:[%s1 + $0x220] sm:$0xff]
    %v87 = vld [vmem:[%s1 + $0x228] sm:$0xff]
    %v88 = vld [vmem:[%s1 + $0x230] sm:$0xff]
    %v89 = vld [vmem:[%s1 + $0x238] sm:$0xff]
    %v90 = vld [vmem:[%s1 + $0x240] sm:$0xff]
    %v91 = vld [vmem:[%s1 + $0x248] sm:$0xff]
    %v92 = vld [vmem:[%s1 + $0x250] sm:$0xff]
    %v93 = vld [vmem:[%s1 + $0x258] sm:$0xff]
    %v94 = vld [vmem:[%s1 + $0x260] sm:$0xff]
    %v95 = vld [vmem:[%s1 + $0x268] sm:$0xff]
    %v96 = vld [vmem:[%s1 + $0x270] sm:$0xff]
    %v97 = vld [vmem:[%s1 + $0x278] sm:$0xff]
    %v98 = vld [vmem:[%s1 + $0x280] sm:$0xff]
    %v99 = vld [vmem:[%s1 + $0x288] sm:$0xff]
    %v100 = vld [vmem:[%s1 + $0x290] sm:$0xff]
    %v101 = vld [vmem:[%s1 + $0x298] sm:$0xff]
    %v102 = vld [vmem:[%s1 + $0x2a0] sm:$0xff]
    %v103 = vld [vmem:[%s1 + $0x2a8] sm:$0xff]
    %v104 = vld [vmem:[%s1 + $0x2b0] sm:$0xff]
    %v105 = vld [vmem:[%s1 + $0x2b8] sm:$0xff]
    %v106 = vld [vmem:[%s1 + $0x2c0] sm:$0xff]
    %v107 = vld [vmem:[%s1 + $0x2c8] sm:$0xff]
    %v108 = vld [vmem:[%s1 + $0x2d0] sm:$0xff]
    %v109 = vld [vmem:[%s1 + $0x2d8] sm:$0xff]
    %v110 = vld [vmem:[%s1 + $0x2e0] sm:$0xff]
    %v111 = vld [vmem:[%s1 + $0x2e8] sm:$0xff]
    %v112 = vld [vmem:[%s1 + $0x2f0] sm:$0xff]
    %v113 = vld [vmem:[%s1 + $0x2f8] sm:$0xff]
    %v114 = vld [vmem:[%s1 + $0x300] sm:$0xff]
    %v115 = vld [vmem:[%s1 + $0x308] sm:$0xff]
    %v116 = vld [vmem:[%s1 + $0x310] sm:$0xff]
    %v117 = vld [vmem:[%s1 + $0x318] sm:$0xff]
    %v118 = vld [vmem:[%s1 + $0x320] sm:$0xff]
    %v119 = vld [vmem:[%s1 + $0x328] sm:$0xff]
    %v120 = vld [vmem:[%s1 + $0x330] sm:$0xff]
    %v121 = vld [vmem:[%s1 + $0x338] sm:$0xff]
    %v122 = vld [vmem:[%s1 + $0x340] sm:$0xff]
    %v123 = vld [vmem:[%s1 + $0x348] sm:$0xff]
    %v124 = vld [vmem:[%s1 + $0x350] sm:$0xff]
    %v125 = vld [vmem:[%s1 + $0x358] sm:$0xff]
    %v126 = vld [vmem:[%s1 + $0x360] sm:$0xff]
    %v127 = vld [vmem:[%s1 + $0x368] sm:$0xff]
    %v128 = vld [vmem:[%s1 + $0x370] sm:$0xff]
    %v129 = vld [vmem:[%s1 + $0x378] sm:$0xff]
    %v130 = vld [vmem:[%s1 + $0x380] sm:$0xff]
    %v131 = vld [vmem:[%s1 + $0x388] sm:$0xff]
    %v132 = vld [vmem:[%s1 + $0x390] sm:$0xff]
    %v133 = vld [vmem:[%s1 + $0x398] sm:$0xff]
    %v134 = vld [vmem:[%s1 + $0x3a0] sm:$0xff]
    %v135 = vld [vmem:[%s1 + $0x3a8] sm:$0xff]
    %v136 = vld [vmem:[%s1 + $0x3b0] sm:$0xff]
    %v137 = vld [vmem:[%s1 + $0x3b8] sm:$0xff]
    %v138 = vld [vmem:[%s1 + $0x3c0] sm:$0xff]
    %v139 = vld [vmem:[%s1 + $0x3c8] sm:$0xff]
    %v140 = vld [vmem:[%s1 + $0x3d0] sm:$0xff]
    %v141 = vld [vmem:[%s1 + $0x3d8] sm:$0xff]
    %v142 = vld [vmem:[%s1 + $0x3e0] sm:$0xff]
    %v143 = vld [vmem:[%s1 + $0x3e8] sm:$0xff]
    %v144 = vld [vmem:[%s1 + $0x3f0] sm:$0xff]
    %v145 = vld [vmem:[%s1 + $0x3f8] sm:$0xff]
    %v146 = vld [vmem:[%s2] sm:$0xff]
    %v147 = vld [vmem:[%s2 + $0x8] sm:$0xff]
    %v148 = vld [vmem:[%s2 + $0x10] sm:$0xff]
    %v149 = vld [vmem:[%s2 + $0x18] sm:$0xff]
    %vm150 = vcmask 261120
    %v152 = vsel %vm150, %v18, 0
    %v155 = vsel %vm150, %v19, 0
    %v158 = vsel %vm150, %v20, 0
    %v161 = vsel %vm150, %v21, 0
    %v164 = vsel %vm150, %v22, 0
    %v167 = vsel %vm150, %v23, 0
    %v170 = vsel %vm150, %v24, 0
    %v173 = vsel %vm150, %v25, 0
    %v176 = vsel %vm150, %v26, 0
    %v179 = vsel %vm150, %v27, 0
    %v182 = vsel %vm150, %v28, 0
    %v185 = vsel %vm150, %v29, 0
    %v188 = vsel %vm150, %v30, 0
    %v191 = vsel %vm150, %v31, 0
    %v194 = vsel %vm150, %v32, 0
    %v197 = vsel %vm150, %v33, 0
    %v200 = vsel %vm150, %v34, 0
    %v203 = vsel %vm150, %v35, 0
    %v206 = vsel %vm150, %v36, 0
    %v209 = vsel %vm150, %v37, 0
    %v212 = vsel %vm150, %v38, 0
    %v215 = vsel %vm150, %v39, 0
    %v218 = vsel %vm150, %v40, 0
    %v221 = vsel %vm150, %v41, 0
    %v224 = vsel %vm150, %v42, 0
    %v227 = vsel %vm150, %v43, 0
    %v230 = vsel %vm150, %v44, 0
    %v233 = vsel %vm150, %v45, 0
    %v236 = vsel %vm150, %v46, 0
    %v239 = vsel %vm150, %v47, 0
    %v242 = vsel %vm150, %v48, 0
    %v245 = vsel %vm150, %v49, 0
    %v248 = vsel %vm150, %v50, 0
    %v251 = vsel %vm150, %v51, 0
    %v254 = vsel %vm150, %v52, 0
    %v257 = vsel %vm150, %v53, 0
    %v260 = vsel %vm150, %v54, 0
    %v263 = vsel %vm150, %v55, 0
    %v266 = vsel %vm150, %v56, 0
    %v269 = vsel %vm150, %v57, 0
    %v272 = vsel %vm150, %v58, 0
    %v275 = vsel %vm150, %v59, 0
    %v278 = vsel %vm150, %v60, 0
    %v281 = vsel %vm150, %v61, 0
    %v284 = vsel %vm150, %v62, 0
    %v287 = vsel %vm150, %v63, 0
    %v290 = vsel %vm150, %v64, 0
    %v293 = vsel %vm150, %v65, 0
    %v296 = vsel %vm150, %v66, 0
    %v299 = vsel %vm150, %v67, 0
    %v302 = vsel %vm150, %v68, 0
    %v305 = vsel %vm150, %v69, 0
    %v308 = vsel %vm150, %v70, 0
    %v311 = vsel %vm150, %v71, 0
    %v314 = vsel %vm150, %v72, 0
    %v317 = vsel %vm150, %v73, 0
    %v320 = vsel %vm150, %v74, 0
    %v323 = vsel %vm150, %v75, 0
    %v326 = vsel %vm150, %v76, 0
    %v329 = vsel %vm150, %v77, 0
    %v332 = vsel %vm150, %v78, 0
    %v335 = vsel %vm150, %v79, 0
    %v338 = vsel %vm150, %v80, 0
    %v341 = vsel %vm150, %v81, 0
    %v344 = vsel %vm150, %v82, 0
    %v347 = vsel %vm150, %v83, 0
    %v350 = vsel %vm150, %v84, 0
    %v353 = vsel %vm150, %v85, 0
    %v356 = vsel %vm150, %v86, 0
    %v359 = vsel %vm150, %v87, 0
    %v362 = vsel %vm150, %v88, 0
    %v365 = vsel %vm150, %v89, 0
    %v368 = vsel %vm150, %v90, 0
    %v371 = vsel %vm150, %v91, 0
    %v374 = vsel %vm150, %v92, 0
    %v377 = vsel %vm150, %v93, 0
    %v380 = vsel %vm150, %v94, 0
    %v383 = vsel %vm150, %v95, 0
    %v386 = vsel %vm150, %v96, 0
    %v389 = vsel %vm150, %v97, 0
    %v392 = vsel %vm150, %v98, 0
    %v395 = vsel %vm150, %v99, 0
    %v398 = vsel %vm150, %v100, 0
    %v401 = vsel %vm150, %v101, 0
    %v404 = vsel %vm150, %v102, 0
    %v407 = vsel %vm150, %v103, 0
    %v410 = vsel %vm150, %v104, 0
    %v413 = vsel %vm150, %v105, 0
    %v416 = vsel %vm150, %v106, 0
    %v419 = vsel %vm150, %v107, 0
    %v422 = vsel %vm150, %v108, 0
    %v425 = vsel %vm150, %v109, 0
    %v428 = vsel %vm150, %v110, 0
    %v431 = vsel %vm150, %v111, 0
    %v434 = vsel %vm150, %v112, 0
    %v437 = vsel %vm150, %v113, 0
    %v440 = vsel %vm150, %v114, 0
    %v443 = vsel %vm150, %v115, 0
    %v446 = vsel %vm150, %v116, 0
    %v449 = vsel %vm150, %v117, 0
    %v452 = vsel %vm150, %v118, 0
    %v455 = vsel %vm150, %v119, 0
    %v458 = vsel %vm150, %v120, 0
    %v461 = vsel %vm150, %v121, 0
    %v464 = vsel %vm150, %v122, 0
    %v467 = vsel %vm150, %v123, 0
    %v470 = vsel %vm150, %v124, 0
    %v473 = vsel %vm150, %v125, 0
    %v476 = vsel %vm150, %v126, 0
    %v479 = vsel %vm150, %v127, 0
    %v482 = vsel %vm150, %v128, 0
    %v485 = vsel %vm150, %v129, 0
    %v488 = vsel %vm150, %v130, 0
    %v491 = vsel %vm150, %v131, 0
    %v494 = vsel %vm150, %v132, 0
    %v497 = vsel %vm150, %v133, 0
    %v500 = vsel %vm150, %v134, 0
    %v503 = vsel %vm150, %v135, 0
    %v506 = vsel %vm150, %v136, 0
    %v509 = vsel %vm150, %v137, 0
    %v512 = vsel %vm150, %v138, 0
    %v515 = vsel %vm150, %v139, 0
    %v518 = vsel %vm150, %v140, 0
    %v521 = vsel %vm150, %v141, 0
    %v524 = vsel %vm150, %v142, 0
    %v527 = vsel %vm150, %v143, 0
    %v530 = vsel %vm150, %v144, 0
    %v533 = vsel %vm150, %v145, 0
    %535 = vmatprep.subr.mxu0 0.0
    %536 = vmatpush1.msra.mxu0 %v146
    %537 = vmatprep.subr.mxu0 0.0
    %538 = vmatpush1.msra.mxu0 %v147
    %539 = vmatprep.subr.mxu0 0.0
    %540 = vmatpush1.msra.mxu0 %v148
    %541 = vmatprep.subr.mxu0 0.0
    %542 = vmatpush1.msra.mxu0 %v149
    %543 = vmatprep.subr.mxu0 0.0
    %544 = vmatpush1.msra.mxu0 0.0
    %545 = vmatprep.subr.mxu0 0.0
    %546 = vmatpush1.msra.mxu0 0.0
    %547 = vmatprep.subr.mxu0 0.0
    %548 = vmatpush1.msra.mxu0 0.0
    %549 = vmatprep.subr.mxu0 0.0
    %550 = vmatpush1.msra.mxu0 0.0
    %551 = vmatprep.subr.mxu0 0.0
    %552 = vmatpush1.msra.mxu0 0.0
    %553 = vmatprep.subr.mxu0 0.0
    %554 = vmatpush1.msra.mxu0 0.0
    %555 = vmatprep.subr.mxu0 0.0
    %556 = vmatpush1.msra.mxu0 0.0
    %557 = vmatprep.subr.mxu0 0.0
    %558 = vmatpush1.msra.mxu0 0.0
    %559 = vmatprep.subr.mxu0 0.0
    %560 = vmatpush1.msra.mxu0 0.0
    %561 = vmatprep.subr.mxu0 0.0
    %562 = vmatpush1.msra.mxu0 0.0
    %563 = vmatprep.subr.mxu0 0.0
    %564 = vmatpush1.msra.mxu0 0.0
    %565 = vmatprep.subr.mxu0 0.0
    %566 = vmatpush1.msra.mxu0 0.0
    %567 = vmatprep.subr.mxu0 0.0
    %568 = vmatpush1.msra.mxu0 0.0
    %569 = vmatprep.subr.mxu0 0.0
    %570 = vmatpush1.msra.mxu0 0.0
    %571 = vmatprep.subr.mxu0 0.0
    %572 = vmatpush1.msra.mxu0 0.0
    %573 = vmatprep.subr.mxu0 0.0
    %574 = vmatpush1.msra.mxu0 0.0
    %575 = vmatprep.subr.mxu0 0.0
    %576 = vmatpush1.msra.mxu0 0.0
    %577 = vmatprep.subr.mxu0 0.0
    %578 = vmatpush1.msra.mxu0 0.0
    %579 = vmatprep.subr.mxu0 0.0
    %580 = vmatpush1.msra.mxu0 0.0
    %581 = vmatprep.subr.mxu0 0.0
    %582 = vmatpush1.msra.mxu0 0.0
    %583 = vmatprep.subr.mxu0 0.0
    %584 = vmatpush1.msra.mxu0 0.0
    %585 = vmatprep.subr.mxu0 0.0
    %586 = vmatpush1.msra.mxu0 0.0
    %587 = vmatprep.subr.mxu0 0.0
    %588 = vmatpush1.msra.mxu0 0.0
    %589 = vmatprep.subr.mxu0 0.0
    %590 = vmatpush1.msra.mxu0 0.0
    %591 = vmatprep.subr.mxu0 0.0
    %592 = vmatpush1.msra.mxu0 0.0
    %593 = vmatprep.subr.mxu0 0.0
    %594 = vmatpush1.msra.mxu0 0.0
    %595 = vmatprep.subr.mxu0 0.0
    %596 = vmatpush1.msra.mxu0 0.0
    %597 = vmatprep.subr.mxu0 0.0
    %598 = vmatpush1.msra.mxu0 0.0
    %599 = vmatprep.mubr.f32.mxu0 0.0
    %600 = vmatmul.mubr.f32.gmra.mrb[0].mxu0 %v152
    %v601 = vpop.f32.mrb[0].mxu0
    %v602 = vadd.f32 0.0, %v601
    %v603 = vpop.f32.mrb[0].mxu0
    %604 = vmatprep.mubr.f32.mxu0 0.0
    %605 = vmatmul.mubr.f32.gmra.mrb[0].mxu0 %v155
    %v606 = vpop.f32.mrb[0].mxu0
    %v607 = vadd.f32 0.0, %v606
    %v608 = vpop.f32.mrb[0].mxu0
    %609 = vmatprep.mubr.f32.mxu0 0.0
    %610 = vmatmul.mubr.f32.gmra.mrb[0].mxu0 %v158
    %v611 = vpop.f32.mrb[0].mxu0
    %v612 = vadd.f32 0.0, %v611
    %v613 = vpop.f32.mrb[0].mxu0
    %614 = vmatprep.mubr.f32.mxu0 0.0
    %615 = vmatmul.mubr.f32.gmra.mrb[0].mxu0 %v161
    %v616 = vpop.f32.mrb[0].mxu0
    %v617 = vadd.f32 0.0, %v616
    %v618 = vpop.f32.mrb[0].mxu0
    %619 = vmatprep.mubr.f32.mxu0 0.0
    %620 = vmatmul.mubr.f32.gmra.mrb[0].mxu0 %v164
    %v621 = vpop.f32.mrb[0].mxu0
    %v622 = vadd.f32 0.0, %v621
    %v623 = vpop.f32.mrb[0].mxu0
    %624 = vmatprep.mubr.f32.mxu0 0.0
    %625 = vmatmul.mubr.f32.gmra.mrb[0].mxu0 %v167
    %v626 = vpop.f32.mrb[0].mxu0
    %v627 = vadd.f32 0.0, %v626
    %v628 = vpop.f32.mrb[0].mxu0
    %629 = vmatprep.mubr.f32.mxu0 0.0
    %630 = vmatmul.mubr.f32.gmra.mrb[0].mxu0 %v170
    %v631 = vpop.f32.mrb[0].mxu0
    %v632 = vadd.f32 0.0, %v631
    %v633 = vpop.f32.mrb[0].mxu0
    %634 = vmatprep.mubr.f32.mxu0 0.0
    %635 = vmatmul.mubr.f32.gmra.mrb[0].mxu0 %v173
    %v636 = vpop.f32.mrb[0].mxu0
    %v637 = vadd.f32 0.0, %v636
    %v638 = vpop.f32.mrb[0].mxu0
    %639 = vmatprep.mubr.f32.mxu0 0.0
    %640 = vmatmul.mubr.f32.gmra.mrb[0].mxu0 %v176
    %v641 = vpop.f32.mrb[0].mxu0
    %v642 = vadd.f32 0.0, %v641
    %v643 = vpop.f32.mrb[0].mxu0
    %644 = vmatprep.mubr.f32.mxu0 0.0
    %645 = vmatmul.mubr.f32.gmra.mrb[0].mxu0 %v179
    %v646 = vpop.f32.mrb[0].mxu0
    %v647 = vadd.f32 0.0, %v646
    %v648 = vpop.f32.mrb[0].mxu0
    %649 = vmatprep.mubr.f32.mxu0 0.0
    %650 = vmatmul.mubr.f32.gmra.mrb[0].mxu0 %v182
    %v651 = vpop.f32.mrb[0].mxu0
    %v652 = vadd.f32 0.0, %v651
    %v653 = vpop.f32.mrb[0].mxu0
    %654 = vmatprep.mubr.f32.mxu0 0.0
    %655 = vmatmul.mubr.f32.gmra.mrb[0].mxu0 %v185
    %v656 = vpop.f32.mrb[0].mxu0
    %v657 = vadd.f32 0.0, %v656
    %v658 = vpop.f32.mrb[0].mxu0
    %659 = vmatprep.mubr.f32.mxu0 0.0
    %660 = vmatmul.mubr.f32.gmra.mrb[0].mxu0 %v188
    %v661 = vpop.f32.mrb[0].mxu0
    %v662 = vadd.f32 0.0, %v661
    %v663 = vpop.f32.mrb[0].mxu0
    %664 = vmatprep.mubr.f32.mxu0 0.0
    %665 = vmatmul.mubr.f32.gmra.mrb[0].mxu0 %v191
    %v666 = vpop.f32.mrb[0].mxu0
    %v667 = vadd.f32 0.0, %v666
    %v668 = vpop.f32.mrb[0].mxu0
    %669 = vmatprep.mubr.f32.mxu0 0.0
    %670 = vmatmul.mubr.f32.gmra.mrb[0].mxu0 %v194
    %v671 = vpop.f32.mrb[0].mxu0
    %v672 = vadd.f32 0.0, %v671
    %v673 = vpop.f32.mrb[0].mxu0
    %674 = vmatprep.mubr.f32.mxu0 0.0
    %675 = vmatmul.mubr.f32.gmra.mrb[0].mxu0 %v197
    %v676 = vpop.f32.mrb[0].mxu0
    %v677 = vadd.f32 0.0, %v676
    %v678 = vpop.f32.mrb[0].mxu0
    %679 = vmatprep.mubr.f32.mxu0 0.0
    %680 = vmatmul.mubr.f32.gmra.mrb[0].mxu0 %v200
    %v681 = vpop.f32.mrb[0].mxu0
    %v682 = vadd.f32 0.0, %v681
    %v683 = vpop.f32.mrb[0].mxu0
    %684 = vmatprep.mubr.f32.mxu0 0.0
    %685 = vmatmul.mubr.f32.gmra.mrb[0].mxu0 %v203
    %v686 = vpop.f32.mrb[0].mxu0
    %v687 = vadd.f32 0.0, %v686
    %v688 = vpop.f32.mrb[0].mxu0
    %689 = vmatprep.mubr.f32.mxu0 0.0
    %690 = vmatmul.mubr.f32.gmra.mrb[0].mxu0 %v206
    %v691 = vpop.f32.mrb[0].mxu0
    %v692 = vadd.f32 0.0, %v691
    %v693 = vpop.f32.mrb[0].mxu0
    %694 = vmatprep.mubr.f32.mxu0 0.0
    %695 = vmatmul.mubr.f32.gmra.mrb[0].mxu0 %v209
    %v696 = vpop.f32.mrb[0].mxu0
    %v697 = vadd.f32 0.0, %v696
    %v698 = vpop.f32.mrb[0].mxu0
    %699 = vmatprep.mubr.f32.mxu0 0.0
    %700 = vmatmul.mubr.f32.gmra.mrb[0].mxu0 %v212
    %v701 = vpop.f32.mrb[0].mxu0
    %v702 = vadd.f32 0.0, %v701
    %v703 = vpop.f32.mrb[0].mxu0
    %704 = vmatprep.mubr.f32.mxu0 0.0
    %705 = vmatmul.mubr.f32.gmra.mrb[0].mxu0 %v215
    %v706 = vpop.f32.mrb[0].mxu0
    %v707 = vadd.f32 0.0, %v706
    %v708 = vpop.f32.mrb[0].mxu0
    %709 = vmatprep.mubr.f32.mxu0 0.0
    %710 = vmatmul.mubr.f32.gmra.mrb[0].mxu0 %v218
    %v711 = vpop.f32.mrb[0].mxu0
    %v712 = vadd.f32 0.0, %v711
    %v713 = vpop.f32.mrb[0].mxu0
    %714 = vmatprep.mubr.f32.mxu0 0.0
    %715 = vmatmul.mubr.f32.gmra.mrb[0].mxu0 %v221
    %v716 = vpop.f32.mrb[0].mxu0
    %v717 = vadd.f32 0.0, %v716
    %v718 = vpop.f32.mrb[0].mxu0
    %719 = vmatprep.mubr.f32.mxu0 0.0
    %720 = vmatmul.mubr.f32.gmra.mrb[0].mxu0 %v224
    %v721 = vpop.f32.mrb[0].mxu0
    %v722 = vadd.f32 0.0, %v721
    %v723 = vpop.f32.mrb[0].mxu0
    %724 = vmatprep.mubr.f32.mxu0 0.0
    %725 = vmatmul.mubr.f32.gmra.mrb[0].mxu0 %v227
    %v726 = vpop.f32.mrb[0].mxu0
    %v727 = vadd.f32 0.0, %v726
    %v728 = vpop.f32.mrb[0].mxu0
    %729 = vmatprep.mubr.f32.mxu0 0.0
    %730 = vmatmul.mubr.f32.gmra.mrb[0].mxu0 %v230
    %v731 = vpop.f32.mrb[0].mxu0
    %v732 = vadd.f32 0.0, %v731
    %v733 = vpop.f32.mrb[0].mxu0
    %734 = vmatprep.mubr.f32.mxu0 0.0
    %735 = vmatmul.mubr.f32.gmra.mrb[0].mxu0 %v233
    %v736 = vpop.f32.mrb[0].mxu0
    %v737 = vadd.f32 0.0, %v736
    %v738 = vpop.f32.mrb[0].mxu0
    %739 = vmatprep.mubr.f32.mxu0 0.0
    %740 = vmatmul.mubr.f32.gmra.mrb[0].mxu0 %v236
    %v741 = vpop.f32.mrb[0].mxu0
    %v742 = vadd.f32 0.0, %v741
    %v743 = vpop.f32.mrb[0].mxu0
    %744 = vmatprep.mubr.f32.mxu0 0.0
    %745 = vmatmul.mubr.f32.gmra.mrb[0].mxu0 %v239
    %v746 = vpop.f32.mrb[0].mxu0
    %v747 = vadd.f32 0.0, %v746
    %v748 = vpop.f32.mrb[0].mxu0
    %749 = vmatprep.mubr.f32.mxu0 0.0
    %750 = vmatmul.mubr.f32.gmra.mrb[0].mxu0 %v242
    %v751 = vpop.f32.mrb[0].mxu0
    %v752 = vadd.f32 0.0, %v751
    %v753 = vpop.f32.mrb[0].mxu0
    %754 = vmatprep.mubr.f32.mxu0 0.0
    %755 = vmatmul.mubr.f32.gmra.mrb[0].mxu0 %v245
    %v756 = vpop.f32.mrb[0].mxu0
    %v757 = vadd.f32 0.0, %v756
    %v758 = vpop.f32.mrb[0].mxu0
    %759 = vmatprep.mubr.f32.mxu0 0.0
    %760 = vmatmul.mubr.f32.gmra.mrb[0].mxu0 %v248
    %v761 = vpop.f32.mrb[0].mxu0
    %v762 = vadd.f32 0.0, %v761
    %v763 = vpop.f32.mrb[0].mxu0
    %764 = vmatprep.mubr.f32.mxu0 0.0
    %765 = vmatmul.mubr.f32.gmra.mrb[0].mxu0 %v251
    %v766 = vpop.f32.mrb[0].mxu0
    %v767 = vadd.f32 0.0, %v766
    %v768 = vpop.f32.mrb[0].mxu0
    %769 = vmatprep.mubr.f32.mxu0 0.0
    %770 = vmatmul.mubr.f32.gmra.mrb[0].mxu0 %v254
    %v771 = vpop.f32.mrb[0].mxu0
    %v772 = vadd.f32 0.0, %v771
    %v773 = vpop.f32.mrb[0].mxu0
    %774 = vmatprep.mubr.f32.mxu0 0.0
    %775 = vmatmul.mubr.f32.gmra.mrb[0].mxu0 %v257
    %v776 = vpop.f32.mrb[0].mxu0
    %v777 = vadd.f32 0.0, %v776
    %v778 = vpop.f32.mrb[0].mxu0
    %779 = vmatprep.mubr.f32.mxu0 0.0
    %780 = vmatmul.mubr.f32.gmra.mrb[0].mxu0 %v260
    %v781 = vpop.f32.mrb[0].mxu0
    %v782 = vadd.f32 0.0, %v781
    %v783 = vpop.f32.mrb[0].mxu0
    %784 = vmatprep.mubr.f32.mxu0 0.0
    %785 = vmatmul.mubr.f32.gmra.mrb[0].mxu0 %v263
    %v786 = vpop.f32.mrb[0].mxu0
    %v787 = vadd.f32 0.0, %v786
    %v788 = vpop.f32.mrb[0].mxu0
    %789 = vmatprep.mubr.f32.mxu0 0.0
    %790 = vmatmul.mubr.f32.gmra.mrb[0].mxu0 %v266
    %v791 = vpop.f32.mrb[0].mxu0
    %v792 = vadd.f32 0.0, %v791
    %v793 = vpop.f32.mrb[0].mxu0
    %794 = vmatprep.mubr.f32.mxu0 0.0
    %795 = vmatmul.mubr.f32.gmra.mrb[0].mxu0 %v269
    %v796 = vpop.f32.mrb[0].mxu0
    %v797 = vadd.f32 0.0, %v796
    %v798 = vpop.f32.mrb[0].mxu0
    %799 = vmatprep.mubr.f32.mxu0 0.0
    %800 = vmatmul.mubr.f32.gmra.mrb[0].mxu0 %v272
    %v801 = vpop.f32.mrb[0].mxu0
    %v802 = vadd.f32 0.0, %v801
    %v803 = vpop.f32.mrb[0].mxu0
    %804 = vmatprep.mubr.f32.mxu0 0.0
    %805 = vmatmul.mubr.f32.gmra.mrb[0].mxu0 %v275
    %v806 = vpop.f32.mrb[0].mxu0
    %v807 = vadd.f32 0.0, %v806
    %v808 = vpop.f32.mrb[0].mxu0
    %809 = vmatprep.mubr.f32.mxu0 0.0
    %810 = vmatmul.mubr.f32.gmra.mrb[0].mxu0 %v278
    %v811 = vpop.f32.mrb[0].mxu0
    %v812 = vadd.f32 0.0, %v811
    %v813 = vpop.f32.mrb[0].mxu0
    %814 = vmatprep.mubr.f32.mxu0 0.0
    %815 = vmatmul.mubr.f32.gmra.mrb[0].mxu0 %v281
    %v816 = vpop.f32.mrb[0].mxu0
    %v817 = vadd.f32 0.0, %v816
    %v818 = vpop.f32.mrb[0].mxu0
    %819 = vmatprep.mubr.f32.mxu0 0.0
    %820 = vmatmul.mubr.f32.gmra.mrb[0].mxu0 %v284
    %v821 = vpop.f32.mrb[0].mxu0
    %v822 = vadd.f32 0.0, %v821
    %v823 = vpop.f32.mrb[0].mxu0
    %824 = vmatprep.mubr.f32.mxu0 0.0
    %825 = vmatmul.mubr.f32.gmra.mrb[0].mxu0 %v287
    %v826 = vpop.f32.mrb[0].mxu0
    %v827 = vadd.f32 0.0, %v826
    %v828 = vpop.f32.mrb[0].mxu0
    %829 = vmatprep.mubr.f32.mxu0 0.0
    %830 = vmatmul.mubr.f32.gmra.mrb[0].mxu0 %v290
    %v831 = vpop.f32.mrb[0].mxu0
    %v832 = vadd.f32 0.0, %v831
    %v833 = vpop.f32.mrb[0].mxu0
    %834 = vmatprep.mubr.f32.mxu0 0.0
    %835 = vmatmul.mubr.f32.gmra.mrb[0].mxu0 %v293
    %v836 = vpop.f32.mrb[0].mxu0
    %v837 = vadd.f32 0.0, %v836
    %v838 = vpop.f32.mrb[0].mxu0
    %839 = vmatprep.mubr.f32.mxu0 0.0
    %840 = vmatmul.mubr.f32.gmra.mrb[0].mxu0 %v296
    %v841 = vpop.f32.mrb[0].mxu0
    %v842 = vadd.f32 0.0, %v841
    %v843 = vpop.f32.mrb[0].mxu0
    %844 = vmatprep.mubr.f32.mxu0 0.0
    %845 = vmatmul.mubr.f32.gmra.mrb[0].mxu0 %v299
    %v846 = vpop.f32.mrb[0].mxu0
    %v847 = vadd.f32 0.0, %v846
    %v848 = vpop.f32.mrb[0].mxu0
    %849 = vmatprep.mubr.f32.mxu0 0.0
    %850 = vmatmul.mubr.f32.gmra.mrb[0].mxu0 %v302
    %v851 = vpop.f32.mrb[0].mxu0
    %v852 = vadd.f32 0.0, %v851
    %v853 = vpop.f32.mrb[0].mxu0
    %854 = vmatprep.mubr.f32.mxu0 0.0
    %855 = vmatmul.mubr.f32.gmra.mrb[0].mxu0 %v305
    %v856 = vpop.f32.mrb[0].mxu0
    %v857 = vadd.f32 0.0, %v856
    %v858 = vpop.f32.mrb[0].mxu0
    %859 = vmatprep.mubr.f32.mxu0 0.0
    %860 = vmatmul.mubr.f32.gmra.mrb[0].mxu0 %v308
    %v861 = vpop.f32.mrb[0].mxu0
    %v862 = vadd.f32 0.0, %v861
    %v863 = vpop.f32.mrb[0].mxu0
    %864 = vmatprep.mubr.f32.mxu0 0.0
    %865 = vmatmul.mubr.f32.gmra.mrb[0].mxu0 %v311
    %v866 = vpop.f32.mrb[0].mxu0
    %v867 = vadd.f32 0.0, %v866
    %v868 = vpop.f32.mrb[0].mxu0
    %869 = vmatprep.mubr.f32.mxu0 0.0
    %870 = vmatmul.mubr.f32.gmra.mrb[0].mxu0 %v314
    %v871 = vpop.f32.mrb[0].mxu0
    %v872 = vadd.f32 0.0, %v871
    %v873 = vpop.f32.mrb[0].mxu0
    %874 = vmatprep.mubr.f32.mxu0 0.0
    %875 = vmatmul.mubr.f32.gmra.mrb[0].mxu0 %v317
    %v876 = vpop.f32.mrb[0].mxu0
    %v877 = vadd.f32 0.0, %v876
    %v878 = vpop.f32.mrb[0].mxu0
    %879 = vmatprep.mubr.f32.mxu0 0.0
    %880 = vmatmul.mubr.f32.gmra.mrb[0].mxu0 %v320
    %v881 = vpop.f32.mrb[0].mxu0
    %v882 = vadd.f32 0.0, %v881
    %v883 = vpop.f32.mrb[0].mxu0
    %884 = vmatprep.mubr.f32.mxu0 0.0
    %885 = vmatmul.mubr.f32.gmra.mrb[0].mxu0 %v323
    %v886 = vpop.f32.mrb[0].mxu0
    %v887 = vadd.f32 0.0, %v886
    %v888 = vpop.f32.mrb[0].mxu0
    %889 = vmatprep.mubr.f32.mxu0 0.0
    %890 = vmatmul.mubr.f32.gmra.mrb[0].mxu0 %v326
    %v891 = vpop.f32.mrb[0].mxu0
    %v892 = vadd.f32 0.0, %v891
    %v893 = vpop.f32.mrb[0].mxu0
    %894 = vmatprep.mubr.f32.mxu0 0.0
    %895 = vmatmul.mubr.f32.gmra.mrb[0].mxu0 %v329
    %v896 = vpop.f32.mrb[0].mxu0
    %v897 = vadd.f32 0.0, %v896
    %v898 = vpop.f32.mrb[0].mxu0
    %899 = vmatprep.mubr.f32.mxu0 0.0
    %900 = vmatmul.mubr.f32.gmra.mrb[0].mxu0 %v332
    %v901 = vpop.f32.mrb[0].mxu0
    %v902 = vadd.f32 0.0, %v901
    %v903 = vpop.f32.mrb[0].mxu0
    %904 = vmatprep.mubr.f32.mxu0 0.0
    %905 = vmatmul.mubr.f32.gmra.mrb[0].mxu0 %v335
    %v906 = vpop.f32.mrb[0].mxu0
    %v907 = vadd.f32 0.0, %v906
    %v908 = vpop.f32.mrb[0].mxu0
    %909 = vmatprep.mubr.f32.mxu0 0.0
    %910 = vmatmul.mubr.f32.gmra.mrb[0].mxu0 %v338
    %v911 = vpop.f32.mrb[0].mxu0
    %v912 = vadd.f32 0.0, %v911
    %v913 = vpop.f32.mrb[0].mxu0
    %914 = vmatprep.mubr.f32.mxu0 0.0
    %915 = vmatmul.mubr.f32.gmra.mrb[0].mxu0 %v341
    %v916 = vpop.f32.mrb[0].mxu0
    %v917 = vadd.f32 0.0, %v916
    %v918 = vpop.f32.mrb[0].mxu0
    %919 = vmatprep.mubr.f32.mxu0 0.0
    %920 = vmatmul.mubr.f32.gmra.mrb[0].mxu0 %v344
    %v921 = vpop.f32.mrb[0].mxu0
    %v922 = vadd.f32 0.0, %v921
    %v923 = vpop.f32.mrb[0].mxu0
    %924 = vmatprep.mubr.f32.mxu0 0.0
    %925 = vmatmul.mubr.f32.gmra.mrb[0].mxu0 %v347
    %v926 = vpop.f32.mrb[0].mxu0
    %v927 = vadd.f32 0.0, %v926
    %v928 = vpop.f32.mrb[0].mxu0
    %929 = vmatprep.mubr.f32.mxu0 0.0
    %930 = vmatmul.mubr.f32.gmra.mrb[0].mxu0 %v350
    %v931 = vpop.f32.mrb[0].mxu0
    %v932 = vadd.f32 0.0, %v931
    %v933 = vpop.f32.mrb[0].mxu0
    %934 = vmatprep.mubr.f32.mxu0 0.0
    %935 = vmatmul.mubr.f32.gmra.mrb[0].mxu0 %v353
    %v936 = vpop.f32.mrb[0].mxu0
    %v937 = vadd.f32 0.0, %v936
    %v938 = vpop.f32.mrb[0].mxu0
    %939 = vmatprep.mubr.f32.mxu0 0.0
    %940 = vmatmul.mubr.f32.gmra.mrb[0].mxu0 %v356
    %v941 = vpop.f32.mrb[0].mxu0
    %v942 = vadd.f32 0.0, %v941
    %v943 = vpop.f32.mrb[0].mxu0
    %944 = vmatprep.mubr.f32.mxu0 0.0
    %945 = vmatmul.mubr.f32.gmra.mrb[0].mxu0 %v359
    %v946 = vpop.f32.mrb[0].mxu0
    %v947 = vadd.f32 0.0, %v946
    %v948 = vpop.f32.mrb[0].mxu0
    %949 = vmatprep.mubr.f32.mxu0 0.0
    %950 = vmatmul.mubr.f32.gmra.mrb[0].mxu0 %v362
    %v951 = vpop.f32.mrb[0].mxu0
    %v952 = vadd.f32 0.0, %v951
    %v953 = vpop.f32.mrb[0].mxu0
    %954 = vmatprep.mubr.f32.mxu0 0.0
    %955 = vmatmul.mubr.f32.gmra.mrb[0].mxu0 %v365
    %v956 = vpop.f32.mrb[0].mxu0
    %v957 = vadd.f32 0.0, %v956
    %v958 = vpop.f32.mrb[0].mxu0
    %959 = vmatprep.mubr.f32.mxu0 0.0
    %960 = vmatmul.mubr.f32.gmra.mrb[0].mxu0 %v368
    %v961 = vpop.f32.mrb[0].mxu0
    %v962 = vadd.f32 0.0, %v961
    %v963 = vpop.f32.mrb[0].mxu0
    %964 = vmatprep.mubr.f32.mxu0 0.0
    %965 = vmatmul.mubr.f32.gmra.mrb[0].mxu0 %v371
    %v966 = vpop.f32.mrb[0].mxu0
    %v967 = vadd.f32 0.0, %v966
    %v968 = vpop.f32.mrb[0].mxu0
    %969 = vmatprep.mubr.f32.mxu0 0.0
    %970 = vmatmul.mubr.f32.gmra.mrb[0].mxu0 %v374
    %v971 = vpop.f32.mrb[0].mxu0
    %v972 = vadd.f32 0.0, %v971
    %v973 = vpop.f32.mrb[0].mxu0
    %974 = vmatprep.mubr.f32.mxu0 0.0
    %975 = vmatmul.mubr.f32.gmra.mrb[0].mxu0 %v377
    %v976 = vpop.f32.mrb[0].mxu0
    %v977 = vadd.f32 0.0, %v976
    %v978 = vpop.f32.mrb[0].mxu0
    %979 = vmatprep.mubr.f32.mxu0 0.0
    %980 = vmatmul.mubr.f32.gmra.mrb[0].mxu0 %v380
    %v981 = vpop.f32.mrb[0].mxu0
    %v982 = vadd.f32 0.0, %v981
    %v983 = vpop.f32.mrb[0].mxu0
    %984 = vmatprep.mubr.f32.mxu0 0.0
    %985 = vmatmul.mubr.f32.gmra.mrb[0].mxu0 %v383
    %v986 = vpop.f32.mrb[0].mxu0
    %v987 = vadd.f32 0.0, %v986
    %v988 = vpop.f32.mrb[0].mxu0
    %989 = vmatprep.mubr.f32.mxu0 0.0
    %990 = vmatmul.mubr.f32.gmra.mrb[0].mxu0 %v386
    %v991 = vpop.f32.mrb[0].mxu0
    %v992 = vadd.f32 0.0, %v991
    %v993 = vpop.f32.mrb[0].mxu0
    %994 = vmatprep.mubr.f32.mxu0 0.0
    %995 = vmatmul.mubr.f32.gmra.mrb[0].mxu0 %v389
    %v996 = vpop.f32.mrb[0].mxu0
    %v997 = vadd.f32 0.0, %v996
    %v998 = vpop.f32.mrb[0].mxu0
    %999 = vmatprep.mubr.f32.mxu0 0.0
    %1000 = vmatmul.mubr.f32.gmra.mrb[0].mxu0 %v392
    %v1001 = vpop.f32.mrb[0].mxu0
    %v1002 = vadd.f32 0.0, %v1001
    %v1003 = vpop.f32.mrb[0].mxu0
    %1004 = vmatprep.mubr.f32.mxu0 0.0
    %1005 = vmatmul.mubr.f32.gmra.mrb[0].mxu0 %v395
    %v1006 = vpop.f32.mrb[0].mxu0
    %v1007 = vadd.f32 0.0, %v1006
    %v1008 = vpop.f32.mrb[0].mxu0
    %1009 = vmatprep.mubr.f32.mxu0 0.0
    %1010 = vmatmul.mubr.f32.gmra.mrb[0].mxu0 %v398
    %v1011 = vpop.f32.mrb[0].mxu0
    %v1012 = vadd.f32 0.0, %v1011
    %v1013 = vpop.f32.mrb[0].mxu0
    %1014 = vmatprep.mubr.f32.mxu0 0.0
    %1015 = vmatmul.mubr.f32.gmra.mrb[0].mxu0 %v401
    %v1016 = vpop.f32.mrb[0].mxu0
    %v1017 = vadd.f32 0.0, %v1016
    %v1018 = vpop.f32.mrb[0].mxu0
    %1019 = vmatprep.mubr.f32.mxu0 0.0
    %1020 = vmatmul.mubr.f32.gmra.mrb[0].mxu0 %v404
    %v1021 = vpop.f32.mrb[0].mxu0
    %v1022 = vadd.f32 0.0, %v1021
    %v1023 = vpop.f32.mrb[0].mxu0
    %1024 = vmatprep.mubr.f32.mxu0 0.0
    %1025 = vmatmul.mubr.f32.gmra.mrb[0].mxu0 %v407
    %v1026 = vpop.f32.mrb[0].mxu0
    %v1027 = vadd.f32 0.0, %v1026
    %v1028 = vpop.f32.mrb[0].mxu0
    %1029 = vmatprep.mubr.f32.mxu0 0.0
    %1030 = vmatmul.mubr.f32.gmra.mrb[0].mxu0 %v410
    %v1031 = vpop.f32.mrb[0].mxu0
    %v1032 = vadd.f32 0.0, %v1031
    %v1033 = vpop.f32.mrb[0].mxu0
    %1034 = vmatprep.mubr.f32.mxu0 0.0
    %1035 = vmatmul.mubr.f32.gmra.mrb[0].mxu0 %v413
    %v1036 = vpop.f32.mrb[0].mxu0
    %v1037 = vadd.f32 0.0, %v1036
    %v1038 = vpop.f32.mrb[0].mxu0
    %1039 = vmatprep.mubr.f32.mxu0 0.0
    %1040 = vmatmul.mubr.f32.gmra.mrb[0].mxu0 %v416
    %v1041 = vpop.f32.mrb[0].mxu0
    %v1042 = vadd.f32 0.0, %v1041
    %v1043 = vpop.f32.mrb[0].mxu0
    %1044 = vmatprep.mubr.f32.mxu0 0.0
    %1045 = vmatmul.mubr.f32.gmra.mrb[0].mxu0 %v419
    %v1046 = vpop.f32.mrb[0].mxu0
    %v1047 = vadd.f32 0.0, %v1046
    %v1048 = vpop.f32.mrb[0].mxu0
    %1049 = vmatprep.mubr.f32.mxu0 0.0
    %1050 = vmatmul.mubr.f32.gmra.mrb[0].mxu0 %v422
    %v1051 = vpop.f32.mrb[0].mxu0
    %v1052 = vadd.f32 0.0, %v1051
    %v1053 = vpop.f32.mrb[0].mxu0
    %1054 = vmatprep.mubr.f32.mxu0 0.0
    %1055 = vmatmul.mubr.f32.gmra.mrb[0].mxu0 %v425
    %v1056 = vpop.f32.mrb[0].mxu0
    %v1057 = vadd.f32 0.0, %v1056
    %v1058 = vpop.f32.mrb[0].mxu0
    %1059 = vmatprep.mubr.f32.mxu0 0.0
    %1060 = vmatmul.mubr.f32.gmra.mrb[0].mxu0 %v428
    %v1061 = vpop.f32.mrb[0].mxu0
    %v1062 = vadd.f32 0.0, %v1061
    %v1063 = vpop.f32.mrb[0].mxu0
    %1064 = vmatprep.mubr.f32.mxu0 0.0
    %1065 = vmatmul.mubr.f32.gmra.mrb[0].mxu0 %v431
    %v1066 = vpop.f32.mrb[0].mxu0
    %v1067 = vadd.f32 0.0, %v1066
    %v1068 = vpop.f32.mrb[0].mxu0
    %1069 = vmatprep.mubr.f32.mxu0 0.0
    %1070 = vmatmul.mubr.f32.gmra.mrb[0].mxu0 %v434
    %v1071 = vpop.f32.mrb[0].mxu0
    %v1072 = vadd.f32 0.0, %v1071
    %v1073 = vpop.f32.mrb[0].mxu0
    %1074 = vmatprep.mubr.f32.mxu0 0.0
    %1075 = vmatmul.mubr.f32.gmra.mrb[0].mxu0 %v437
    %v1076 = vpop.f32.mrb[0].mxu0
    %v1077 = vadd.f32 0.0, %v1076
    %v1078 = vpop.f32.mrb[0].mxu0
    %1079 = vmatprep.mubr.f32.mxu0 0.0
    %1080 = vmatmul.mubr.f32.gmra.mrb[0].mxu0 %v440
    %v1081 = vpop.f32.mrb[0].mxu0
    %v1082 = vadd.f32 0.0, %v1081
    %v1083 = vpop.f32.mrb[0].mxu0
    %1084 = vmatprep.mubr.f32.mxu0 0.0
    %1085 = vmatmul.mubr.f32.gmra.mrb[0].mxu0 %v443
    %v1086 = vpop.f32.mrb[0].mxu0
    %v1087 = vadd.f32 0.0, %v1086
    %v1088 = vpop.f32.mrb[0].mxu0
    %1089 = vmatprep.mubr.f32.mxu0 0.0
    %1090 = vmatmul.mubr.f32.gmra.mrb[0].mxu0 %v446
    %v1091 = vpop.f32.mrb[0].mxu0
    %v1092 = vadd.f32 0.0, %v1091
    %v1093 = vpop.f32.mrb[0].mxu0
    %1094 = vmatprep.mubr.f32.mxu0 0.0
    %1095 = vmatmul.mubr.f32.gmra.mrb[0].mxu0 %v449
    %v1096 = vpop.f32.mrb[0].mxu0
    %v1097 = vadd.f32 0.0, %v1096
    %v1098 = vpop.f32.mrb[0].mxu0
    %1099 = vmatprep.mubr.f32.mxu0 0.0
    %1100 = vmatmul.mubr.f32.gmra.mrb[0].mxu0 %v452
    %v1101 = vpop.f32.mrb[0].mxu0
    %v1102 = vadd.f32 0.0, %v1101
    %v1103 = vpop.f32.mrb[0].mxu0
    %1104 = vmatprep.mubr.f32.mxu0 0.0
    %1105 = vmatmul.mubr.f32.gmra.mrb[0].mxu0 %v455
    %v1106 = vpop.f32.mrb[0].mxu0
    %v1107 = vadd.f32 0.0, %v1106
    %v1108 = vpop.f32.mrb[0].mxu0
    %1109 = vmatprep.mubr.f32.mxu0 0.0
    %1110 = vmatmul.mubr.f32.gmra.mrb[0].mxu0 %v458
    %v1111 = vpop.f32.mrb[0].mxu0
    %v1112 = vadd.f32 0.0, %v1111
    %v1113 = vpop.f32.mrb[0].mxu0
    %1114 = vmatprep.mubr.f32.mxu0 0.0
    %1115 = vmatmul.mubr.f32.gmra.mrb[0].mxu0 %v461
    %v1116 = vpop.f32.mrb[0].mxu0
    %v1117 = vadd.f32 0.0, %v1116
    %v1118 = vpop.f32.mrb[0].mxu0
    %1119 = vmatprep.mubr.f32.mxu0 0.0
    %1120 = vmatmul.mubr.f32.gmra.mrb[0].mxu0 %v464
    %v1121 = vpop.f32.mrb[0].mxu0
    %v1122 = vadd.f32 0.0, %v1121
    %v1123 = vpop.f32.mrb[0].mxu0
    %1124 = vmatprep.mubr.f32.mxu0 0.0
    %1125 = vmatmul.mubr.f32.gmra.mrb[0].mxu0 %v467
    %v1126 = vpop.f32.mrb[0].mxu0
    %v1127 = vadd.f32 0.0, %v1126
    %v1128 = vpop.f32.mrb[0].mxu0
    %1129 = vmatprep.mubr.f32.mxu0 0.0
    %1130 = vmatmul.mubr.f32.gmra.mrb[0].mxu0 %v470
    %v1131 = vpop.f32.mrb[0].mxu0
    %v1132 = vadd.f32 0.0, %v1131
    %v1133 = vpop.f32.mrb[0].mxu0
    %1134 = vmatprep.mubr.f32.mxu0 0.0
    %1135 = vmatmul.mubr.f32.gmra.mrb[0].mxu0 %v473
    %v1136 = vpop.f32.mrb[0].mxu0
    %v1137 = vadd.f32 0.0, %v1136
    %v1138 = vpop.f32.mrb[0].mxu0
    %1139 = vmatprep.mubr.f32.mxu0 0.0
    %1140 = vmatmul.mubr.f32.gmra.mrb[0].mxu0 %v476
    %v1141 = vpop.f32.mrb[0].mxu0
    %v1142 = vadd.f32 0.0, %v1141
    %v1143 = vpop.f32.mrb[0].mxu0
    %1144 = vmatprep.mubr.f32.mxu0 0.0
    %1145 = vmatmul.mubr.f32.gmra.mrb[0].mxu0 %v479
    %v1146 = vpop.f32.mrb[0].mxu0
    %v1147 = vadd.f32 0.0, %v1146
    %v1148 = vpop.f32.mrb[0].mxu0
    %1149 = vmatprep.mubr.f32.mxu0 0.0
    %1150 = vmatmul.mubr.f32.gmra.mrb[0].mxu0 %v482
    %v1151 = vpop.f32.mrb[0].mxu0
    %v1152 = vadd.f32 0.0, %v1151
    %v1153 = vpop.f32.mrb[0].mxu0
    %1154 = vmatprep.mubr.f32.mxu0 0.0
    %1155 = vmatmul.mubr.f32.gmra.mrb[0].mxu0 %v485
    %v1156 = vpop.f32.mrb[0].mxu0
    %v1157 = vadd.f32 0.0, %v1156
    %v1158 = vpop.f32.mrb[0].mxu0
    %1159 = vmatprep.mubr.f32.mxu0 0.0
    %1160 = vmatmul.mubr.f32.gmra.mrb[0].mxu0 %v488
    %v1161 = vpop.f32.mrb[0].mxu0
    %v1162 = vadd.f32 0.0, %v1161
    %v1163 = vpop.f32.mrb[0].mxu0
    %1164 = vmatprep.mubr.f32.mxu0 0.0
    %1165 = vmatmul.mubr.f32.gmra.mrb[0].mxu0 %v491
    %v1166 = vpop.f32.mrb[0].mxu0
    %v1167 = vadd.f32 0.0, %v1166
    %v1168 = vpop.f32.mrb[0].mxu0
    %1169 = vmatprep.mubr.f32.mxu0 0.0
    %1170 = vmatmul.mubr.f32.gmra.mrb[0].mxu0 %v494
    %v1171 = vpop.f32.mrb[0].mxu0
    %v1172 = vadd.f32 0.0, %v1171
    %v1173 = vpop.f32.mrb[0].mxu0
    %1174 = vmatprep.mubr.f32.mxu0 0.0
    %1175 = vmatmul.mubr.f32.gmra.mrb[0].mxu0 %v497
    %v1176 = vpop.f32.mrb[0].mxu0
    %v1177 = vadd.f32 0.0, %v1176
    %v1178 = vpop.f32.mrb[0].mxu0
    %1179 = vmatprep.mubr.f32.mxu0 0.0
    %1180 = vmatmul.mubr.f32.gmra.mrb[0].mxu0 %v500
    %v1181 = vpop.f32.mrb[0].mxu0
    %v1182 = vadd.f32 0.0, %v1181
    %v1183 = vpop.f32.mrb[0].mxu0
    %1184 = vmatprep.mubr.f32.mxu0 0.0
    %1185 = vmatmul.mubr.f32.gmra.mrb[0].mxu0 %v503
    %v1186 = vpop.f32.mrb[0].mxu0
    %v1187 = vadd.f32 0.0, %v1186
    %v1188 = vpop.f32.mrb[0].mxu0
    %1189 = vmatprep.mubr.f32.mxu0 0.0
    %1190 = vmatmul.mubr.f32.gmra.mrb[0].mxu0 %v506
    %v1191 = vpop.f32.mrb[0].mxu0
    %v1192 = vadd.f32 0.0, %v1191
    %v1193 = vpop.f32.mrb[0].mxu0
    %1194 = vmatprep.mubr.f32.mxu0 0.0
    %1195 = vmatmul.mubr.f32.gmra.mrb[0].mxu0 %v509
    %v1196 = vpop.f32.mrb[0].mxu0
    %v1197 = vadd.f32 0.0, %v1196
    %v1198 = vpop.f32.mrb[0].mxu0
    %1199 = vmatprep.mubr.f32.mxu0 0.0
    %1200 = vmatmul.mubr.f32.gmra.mrb[0].mxu0 %v512
    %v1201 = vpop.f32.mrb[0].mxu0
    %v1202 = vadd.f32 0.0, %v1201
    %v1203 = vpop.f32.mrb[0].mxu0
    %1204 = vmatprep.mubr.f32.mxu0 0.0
    %1205 = vmatmul.mubr.f32.gmra.mrb[0].mxu0 %v515
    %v1206 = vpop.f32.mrb[0].mxu0
    %v1207 = vadd.f32 0.0, %v1206
    %v1208 = vpop.f32.mrb[0].mxu0
    %1209 = vmatprep.mubr.f32.mxu0 0.0
    %1210 = vmatmul.mubr.f32.gmra.mrb[0].mxu0 %v518
    %v1211 = vpop.f32.mrb[0].mxu0
    %v1212 = vadd.f32 0.0, %v1211
    %v1213 = vpop.f32.mrb[0].mxu0
    %1214 = vmatprep.mubr.f32.mxu0 0.0
    %1215 = vmatmul.mubr.f32.gmra.mrb[0].mxu0 %v521
    %v1216 = vpop.f32.mrb[0].mxu0
    %v1217 = vadd.f32 0.0, %v1216
    %v1218 = vpop.f32.mrb[0].mxu0
    %1219 = vmatprep.mubr.f32.mxu0 0.0
    %1220 = vmatmul.mubr.f32.gmra.mrb[0].mxu0 %v524
    %v1221 = vpop.f32.mrb[0].mxu0
    %v1222 = vadd.f32 0.0, %v1221
    %v1223 = vpop.f32.mrb[0].mxu0
    %1224 = vmatprep.mubr.f32.mxu0 0.0
    %1225 = vmatmul.mubr.f32.gmra.mrb[0].mxu0 %v527
    %v1226 = vpop.f32.mrb[0].mxu0
    %v1227 = vadd.f32 0.0, %v1226
    %v1228 = vpop.f32.mrb[0].mxu0
    %1229 = vmatprep.mubr.f32.mxu0 0.0
    %1230 = vmatmul.mubr.f32.gmra.mrb[0].mxu0 %v530
    %v1231 = vpop.f32.mrb[0].mxu0
    %v1232 = vadd.f32 0.0, %v1231
    %v1233 = vpop.f32.mrb[0].mxu0
    %1234 = vmatprep.mubr.f32.mxu0 0.0
    %1235 = vmatmul.mubr.f32.gmra.mrb[0].mxu0 %v533
    %v1236 = vpop.f32.mrb[0].mxu0
    %v1237 = vadd.f32 0.0, %v1236
    %v1238 = vpop.f32.mrb[0].mxu0
    %1239 = vdwg.mxu0
    %v1240 = vld [vmem:[%s0] sm:$0x1]
    %v1241 = vld [vmem:[%s0 + $0x1] sm:$0x1]
    %v1242 = vld [vmem:[%s0 + $0x2] sm:$0x1]
    %v1243 = vld [vmem:[%s0 + $0x3] sm:$0x1]
    %v1244 = vld [vmem:[%s0 + $0x4] sm:$0x1]
    %v1245 = vld [vmem:[%s0 + $0x5] sm:$0x1]
    %v1246 = vld [vmem:[%s0 + $0x6] sm:$0x1]
    %v1247 = vld [vmem:[%s0 + $0x7] sm:$0x1]
    %v1256 = vlaneseq
    %v1257 = vshrl.u32 %v1256, 7
    %v1258 = vsub.s32 0, %v1257
    %v1259 = vrot.slane %v1240, %v1258
    %v1260 = vlaneseq
    %v1261 = vshrl.u32 %v1260, 7
    %v1262 = vsub.s32 0, %v1261
    %v1263 = vrot.slane %v1241, %v1262
    %v1264 = vlaneseq
    %v1265 = vshrl.u32 %v1264, 7
    %v1266 = vsub.s32 0, %v1265
    %v1267 = vrot.slane %v1242, %v1266
    %v1268 = vlaneseq
    %v1269 = vshrl.u32 %v1268, 7
    %v1270 = vsub.s32 0, %v1269
    %v1271 = vrot.slane %v1243, %v1270
    %v1272 = vlaneseq
    %v1273 = vshrl.u32 %v1272, 7
    %v1274 = vsub.s32 0, %v1273
    %v1275 = vrot.slane %v1244, %v1274
    %v1276 = vlaneseq
    %v1277 = vshrl.u32 %v1276, 7
    %v1278 = vsub.s32 0, %v1277
    %v1279 = vrot.slane %v1245, %v1278
    %v1280 = vlaneseq
    %v1281 = vshrl.u32 %v1280, 7
    %v1282 = vsub.s32 0, %v1281
    %v1283 = vrot.slane %v1246, %v1282
    %v1284 = vlaneseq
    %v1285 = vshrl.u32 %v1284, 7
    %v1286 = vsub.s32 0, %v1285
    %v1287 = vrot.slane %v1247, %v1286
    %v1296 = vadd.f32 %v602, %v1259
    %v1297 = vadd.f32 %v607, %v1259
    %v1298 = vadd.f32 %v612, %v1259
    %v1299 = vadd.f32 %v617, %v1259
    %v1300 = vadd.f32 %v622, %v1259
    %v1301 = vadd.f32 %v627, %v1259
    %v1302 = vadd.f32 %v632, %v1259
    %v1303 = vadd.f32 %v637, %v1259
    %v1304 = vadd.f32 %v642, %v1259
    %v1305 = vadd.f32 %v647, %v1259
    %v1306 = vadd.f32 %v652, %v1259
    %v1307 = vadd.f32 %v657, %v1259
    %v1308 = vadd.f32 %v662, %v1259
    %v1309 = vadd.f32 %v667, %v1259
    %v1310 = vadd.f32 %v672, %v1259
    %v1311 = vadd.f32 %v677, %v1259
    %v1312 = vadd.f32 %v682, %v1263
    %v1313 = vadd.f32 %v687, %v1263
    %v1314 = vadd.f32 %v692, %v1263
    %v1315 = vadd.f32 %v697, %v1263
    %v1316 = vadd.f32 %v702, %v1263
    %v1317 = vadd.f32 %v707, %v1263
    %v1318 = vadd.f32 %v712, %v1263
    %v1319 = vadd.f32 %v717, %v1263
    %v1320 = vadd.f32 %v722, %v1263
    %v1321 = vadd.f32 %v727, %v1263
    %v1322 = vadd.f32 %v732, %v1263
    %v1323 = vadd.f32 %v737, %v1263
    %v1324 = vadd.f32 %v742, %v1263
    %v1325 = vadd.f32 %v747, %v1263
    %v1326 = vadd.f32 %v752, %v1263
    %v1327 = vadd.f32 %v757, %v1263
    %v1328 = vadd.f32 %v762, %v1267
    %v1329 = vadd.f32 %v767, %v1267
    %v1330 = vadd.f32 %v772, %v1267
    %v1331 = vadd.f32 %v777, %v1267
    %v1332 = vadd.f32 %v782, %v1267
    %v1333 = vadd.f32 %v787, %v1267
    %v1334 = vadd.f32 %v792, %v1267
    %v1335 = vadd.f32 %v797, %v1267
    %v1336 = vadd.f32 %v802, %v1267
    %v1337 = vadd.f32 %v807, %v1267
    %v1338 = vadd.f32 %v812, %v1267
    %v1339 = vadd.f32 %v817, %v1267
    %v1340 = vadd.f32 %v822, %v1267
    %v1341 = vadd.f32 %v827, %v1267
    %v1342 = vadd.f32 %v832, %v1267
    %v1343 = vadd.f32 %v837, %v1267
    %v1344 = vadd.f32 %v842, %v1271
    %v1345 = vadd.f32 %v847, %v1271
    %v1346 = vadd.f32 %v852, %v1271
    %v1347 = vadd.f32 %v857, %v1271
    %v1348 = vadd.f32 %v862, %v1271
    %v1349 = vadd.f32 %v867, %v1271
    %v1350 = vadd.f32 %v872, %v1271
    %v1351 = vadd.f32 %v877, %v1271
    %v1352 = vadd.f32 %v882, %v1271
    %v1353 = vadd.f32 %v887, %v1271
    %v1354 = vadd.f32 %v892, %v1271
    %v1355 = vadd.f32 %v897, %v1271
    %v1356 = vadd.f32 %v902, %v1271
    %v1357 = vadd.f32 %v907, %v1271
    %v1358 = vadd.f32 %v912, %v1271
    %v1359 = vadd.f32 %v917, %v1271
    %v1360 = vadd.f32 %v922, %v1275
    %v1361 = vadd.f32 %v927, %v1275
    %v1362 = vadd.f32 %v932, %v1275
    %v1363 = vadd.f32 %v937, %v1275
    %v1364 = vadd.f32 %v942, %v1275
    %v1365 = vadd.f32 %v947, %v1275
    %v1366 = vadd.f32 %v952, %v1275
    %v1367 = vadd.f32 %v957, %v1275
    %v1368 = vadd.f32 %v962, %v1275
    %v1369 = vadd.f32 %v967, %v1275
    %v1370 = vadd.f32 %v972, %v1275
    %v1371 = vadd.f32 %v977, %v1275
    %v1372 = vadd.f32 %v982, %v1275
    %v1373 = vadd.f32 %v987, %v1275
    %v1374 = vadd.f32 %v992, %v1275
    %v1375 = vadd.f32 %v997, %v1275
    %v1376 = vadd.f32 %v1002, %v1279
    %v1377 = vadd.f32 %v1007, %v1279
    %v1378 = vadd.f32 %v1012, %v1279
    %v1379 = vadd.f32 %v1017, %v1279
    %v1380 = vadd.f32 %v1022, %v1279
    %v1381 = vadd.f32 %v1027, %v1279
    %v1382 = vadd.f32 %v1032, %v1279
    %v1383 = vadd.f32 %v1037, %v1279
    %v1384 = vadd.f32 %v1042, %v1279
    %v1385 = vadd.f32 %v1047, %v1279
    %v1386 = vadd.f32 %v1052, %v1279
    %v1387 = vadd.f32 %v1057, %v1279
    %v1388 = vadd.f32 %v1062, %v1279
    %v1389 = vadd.f32 %v1067, %v1279
    %v1390 = vadd.f32 %v1072, %v1279
    %v1391 = vadd.f32 %v1077, %v1279
    %v1392 = vadd.f32 %v1082, %v1283
    %v1393 = vadd.f32 %v1087, %v1283
    %v1394 = vadd.f32 %v1092, %v1283
    %v1395 = vadd.f32 %v1097, %v1283
    %v1396 = vadd.f32 %v1102, %v1283
    %v1397 = vadd.f32 %v1107, %v1283
    %v1398 = vadd.f32 %v1112, %v1283
    %v1399 = vadd.f32 %v1117, %v1283
    %v1400 = vadd.f32 %v1122, %v1283
    %v1401 = vadd.f32 %v1127, %v1283
    %v1402 = vadd.f32 %v1132, %v1283
    %v1403 = vadd.f32 %v1137, %v1283
    %v1404 = vadd.f32 %v1142, %v1283
    %v1405 = vadd.f32 %v1147, %v1283
    %v1406 = vadd.f32 %v1152, %v1283
    %v1407 = vadd.f32 %v1157, %v1283
    %v1408 = vadd.f32 %v1162, %v1287
    %v1409 = vadd.f32 %v1167, %v1287
    %v1410 = vadd.f32 %v1172, %v1287
    %v1411 = vadd.f32 %v1177, %v1287
    %v1412 = vadd.f32 %v1182, %v1287
    %v1413 = vadd.f32 %v1187, %v1287
    %v1414 = vadd.f32 %v1192, %v1287
    %v1415 = vadd.f32 %v1197, %v1287
    %v1416 = vadd.f32 %v1202, %v1287
    %v1417 = vadd.f32 %v1207, %v1287
    %v1418 = vadd.f32 %v1212, %v1287
    %v1419 = vadd.f32 %v1217, %v1287
    %v1420 = vadd.f32 %v1222, %v1287
    %v1421 = vadd.f32 %v1227, %v1287
    %v1422 = vadd.f32 %v1232, %v1287
    %v1423 = vadd.f32 %v1237, %v1287
    %v1424 = vtanh.pop %v1296
    %v1425 = vtanh.pop %v1297
    %v1426 = vtanh.pop %v1298
    %v1427 = vtanh.pop %v1299
    %v1428 = vtanh.pop %v1300
    %v1429 = vtanh.pop %v1301
    %v1430 = vtanh.pop %v1302
    %v1431 = vtanh.pop %v1303
    %v1432 = vtanh.pop %v1304
    %v1433 = vtanh.pop %v1305
    %v1434 = vtanh.pop %v1306
    %v1435 = vtanh.pop %v1307
    %v1436 = vtanh.pop %v1308
    %v1437 = vtanh.pop %v1309
    %v1438 = vtanh.pop %v1310
    %v1439 = vtanh.pop %v1311
    %v1440 = vtanh.pop %v1312
    %v1441 = vtanh.pop %v1313
    %v1442 = vtanh.pop %v1314
    %v1443 = vtanh.pop %v1315
    %v1444 = vtanh.pop %v1316
    %v1445 = vtanh.pop %v1317
    %v1446 = vtanh.pop %v1318
    %v1447 = vtanh.pop %v1319
    %v1448 = vtanh.pop %v1320
    %v1449 = vtanh.pop %v1321
    %v1450 = vtanh.pop %v1322
    %v1451 = vtanh.pop %v1323
    %v1452 = vtanh.pop %v1324
    %v1453 = vtanh.pop %v1325
    %v1454 = vtanh.pop %v1326
    %v1455 = vtanh.pop %v1327
    %v1456 = vtanh.pop %v1328
    %v1457 = vtanh.pop %v1329
    %v1458 = vtanh.pop %v1330
    %v1459 = vtanh.pop %v1331
    %v1460 = vtanh.pop %v1332
    %v1461 = vtanh.pop %v1333
    %v1462 = vtanh.pop %v1334
    %v1463 = vtanh.pop %v1335
    %v1464 = vtanh.pop %v1336
    %v1465 = vtanh.pop %v1337
    %v1466 = vtanh.pop %v1338
    %v1467 = vtanh.pop %v1339
    %v1468 = vtanh.pop %v1340
    %v1469 = vtanh.pop %v1341
    %v1470 = vtanh.pop %v1342
    %v1471 = vtanh.pop %v1343
    %v1472 = vtanh.pop %v1344
    %v1473 = vtanh.pop %v1345
    %v1474 = vtanh.pop %v1346
    %v1475 = vtanh.pop %v1347
    %v1476 = vtanh.pop %v1348
    %v1477 = vtanh.pop %v1349
    %v1478 = vtanh.pop %v1350
    %v1479 = vtanh.pop %v1351
    %v1480 = vtanh.pop %v1352
    %v1481 = vtanh.pop %v1353
    %v1482 = vtanh.pop %v1354
    %v1483 = vtanh.pop %v1355
    %v1484 = vtanh.pop %v1356
    %v1485 = vtanh.pop %v1357
    %v1486 = vtanh.pop %v1358
    %v1487 = vtanh.pop %v1359
    %v1488 = vtanh.pop %v1360
    %v1489 = vtanh.pop %v1361
    %v1490 = vtanh.pop %v1362
    %v1491 = vtanh.pop %v1363
    %v1492 = vtanh.pop %v1364
    %v1493 = vtanh.pop %v1365
    %v1494 = vtanh.pop %v1366
    %v1495 = vtanh.pop %v1367
    %v1496 = vtanh.pop %v1368
    %v1497 = vtanh.pop %v1369
    %v1498 = vtanh.pop %v1370
    %v1499 = vtanh.pop %v1371
    %v1500 = vtanh.pop %v1372
    %v1501 = vtanh.pop %v1373
    %v1502 = vtanh.pop %v1374
    %v1503 = vtanh.pop %v1375
    %v1504 = vtanh.pop %v1376
    %v1505 = vtanh.pop %v1377
    %v1506 = vtanh.pop %v1378
    %v1507 = vtanh.pop %v1379
    %v1508 = vtanh.pop %v1380
    %v1509 = vtanh.pop %v1381
    %v1510 = vtanh.pop %v1382
    %v1511 = vtanh.pop %v1383
    %v1512 = vtanh.pop %v1384
    %v1513 = vtanh.pop %v1385
    %v1514 = vtanh.pop %v1386
    %v1515 = vtanh.pop %v1387
    %v1516 = vtanh.pop %v1388
    %v1517 = vtanh.pop %v1389
    %v1518 = vtanh.pop %v1390
    %v1519 = vtanh.pop %v1391
    %v1520 = vtanh.pop %v1392
    %v1521 = vtanh.pop %v1393
    %v1522 = vtanh.pop %v1394
    %v1523 = vtanh.pop %v1395
    %v1524 = vtanh.pop %v1396
    %v1525 = vtanh.pop %v1397
    %v1526 = vtanh.pop %v1398
    %v1527 = vtanh.pop %v1399
    %v1528 = vtanh.pop %v1400
    %v1529 = vtanh.pop %v1401
    %v1530 = vtanh.pop %v1402
    %v1531 = vtanh.pop %v1403
    %v1532 = vtanh.pop %v1404
    %v1533 = vtanh.pop %v1405
    %v1534 = vtanh.pop %v1406
    %v1535 = vtanh.pop %v1407
    %v1536 = vtanh.pop %v1408
    %v1537 = vtanh.pop %v1409
    %v1538 = vtanh.pop %v1410
    %v1539 = vtanh.pop %v1411
    %v1540 = vtanh.pop %v1412
    %v1541 = vtanh.pop %v1413
    %v1542 = vtanh.pop %v1414
    %v1543 = vtanh.pop %v1415
    %v1544 = vtanh.pop %v1416
    %v1545 = vtanh.pop %v1417
    %v1546 = vtanh.pop %v1418
    %v1547 = vtanh.pop %v1419
    %v1548 = vtanh.pop %v1420
    %v1549 = vtanh.pop %v1421
    %v1550 = vtanh.pop %v1422
    %v1551 = vtanh.pop %v1423
    %v1552 = vld [vmem:[%s3] sm:$0x1]
    %v1554 = vlaneseq
    %v1555 = vshrl.u32 %v1554, 7
    %v1556 = vsub.s32 0, %v1555
    %v1557 = vrot.slane %v1552, %v1556
    %v1559 = vmul.f32 %v1424, %v1557
    %v1560 = vmul.f32 %v1425, %v1557
    %v1561 = vmul.f32 %v1426, %v1557
    %v1562 = vmul.f32 %v1427, %v1557
    %v1563 = vmul.f32 %v1428, %v1557
    %v1564 = vmul.f32 %v1429, %v1557
    %v1565 = vmul.f32 %v1430, %v1557
    %v1566 = vmul.f32 %v1431, %v1557
    %v1567 = vmul.f32 %v1432, %v1557
    %v1568 = vmul.f32 %v1433, %v1557
    %v1569 = vmul.f32 %v1434, %v1557
    %v1570 = vmul.f32 %v1435, %v1557
    %v1571 = vmul.f32 %v1436, %v1557
    %v1572 = vmul.f32 %v1437, %v1557
    %v1573 = vmul.f32 %v1438, %v1557
    %v1574 = vmul.f32 %v1439, %v1557
    %v1575 = vmul.f32 %v1440, %v1557
    %v1576 = vmul.f32 %v1441, %v1557
    %v1577 = vmul.f32 %v1442, %v1557
    %v1578 = vmul.f32 %v1443, %v1557
    %v1579 = vmul.f32 %v1444, %v1557
    %v1580 = vmul.f32 %v1445, %v1557
    %v1581 = vmul.f32 %v1446, %v1557
    %v1582 = vmul.f32 %v1447, %v1557
    %v1583 = vmul.f32 %v1448, %v1557
    %v1584 = vmul.f32 %v1449, %v1557
    %v1585 = vmul.f32 %v1450, %v1557
    %v1586 = vmul.f32 %v1451, %v1557
    %v1587 = vmul.f32 %v1452, %v1557
    %v1588 = vmul.f32 %v1453, %v1557
    %v1589 = vmul.f32 %v1454, %v1557
    %v1590 = vmul.f32 %v1455, %v1557
    %v1591 = vmul.f32 %v1456, %v1557
    %v1592 = vmul.f32 %v1457, %v1557
    %v1593 = vmul.f32 %v1458, %v1557
    %v1594 = vmul.f32 %v1459, %v1557
    %v1595 = vmul.f32 %v1460, %v1557
    %v1596 = vmul.f32 %v1461, %v1557
    %v1597 = vmul.f32 %v1462, %v1557
    %v1598 = vmul.f32 %v1463, %v1557
    %v1599 = vmul.f32 %v1464, %v1557
    %v1600 = vmul.f32 %v1465, %v1557
    %v1601 = vmul.f32 %v1466, %v1557
    %v1602 = vmul.f32 %v1467, %v1557
    %v1603 = vmul.f32 %v1468, %v1557
    %v1604 = vmul.f32 %v1469, %v1557
    %v1605 = vmul.f32 %v1470, %v1557
    %v1606 = vmul.f32 %v1471, %v1557
    %v1607 = vmul.f32 %v1472, %v1557
    %v1608 = vmul.f32 %v1473, %v1557
    %v1609 = vmul.f32 %v1474, %v1557
    %v1610 = vmul.f32 %v1475, %v1557
    %v1611 = vmul.f32 %v1476, %v1557
    %v1612 = vmul.f32 %v1477, %v1557
    %v1613 = vmul.f32 %v1478, %v1557
    %v1614 = vmul.f32 %v1479, %v1557
    %v1615 = vmul.f32 %v1480, %v1557
    %v1616 = vmul.f32 %v1481, %v1557
    %v1617 = vmul.f32 %v1482, %v1557
    %v1618 = vmul.f32 %v1483, %v1557
    %v1619 = vmul.f32 %v1484, %v1557
    %v1620 = vmul.f32 %v1485, %v1557
    %v1621 = vmul.f32 %v1486, %v1557
    %v1622 = vmul.f32 %v1487, %v1557
    %v1623 = vmul.f32 %v1488, %v1557
    %v1624 = vmul.f32 %v1489, %v1557
    %v1625 = vmul.f32 %v1490, %v1557
    %v1626 = vmul.f32 %v1491, %v1557
    %v1627 = vmul.f32 %v1492, %v1557
    %v1628 = vmul.f32 %v1493, %v1557
    %v1629 = vmul.f32 %v1494, %v1557
    %v1630 = vmul.f32 %v1495, %v1557
    %v1631 = vmul.f32 %v1496, %v1557
    %v1632 = vmul.f32 %v1497, %v1557
    %v1633 = vmul.f32 %v1498, %v1557
    %v1634 = vmul.f32 %v1499, %v1557
    %v1635 = vmul.f32 %v1500, %v1557
    %v1636 = vmul.f32 %v1501, %v1557
    %v1637 = vmul.f32 %v1502, %v1557
    %v1638 = vmul.f32 %v1503, %v1557
    %v1639 = vmul.f32 %v1504, %v1557
    %v1640 = vmul.f32 %v1505, %v1557
    %v1641 = vmul.f32 %v1506, %v1557
    %v1642 = vmul.f32 %v1507, %v1557
    %v1643 = vmul.f32 %v1508, %v1557
    %v1644 = vmul.f32 %v1509, %v1557
    %v1645 = vmul.f32 %v1510, %v1557
    %v1646 = vmul.f32 %v1511, %v1557
    %v1647 = vmul.f32 %v1512, %v1557
    %v1648 = vmul.f32 %v1513, %v1557
    %v1649 = vmul.f32 %v1514, %v1557
    %v1650 = vmul.f32 %v1515, %v1557
    %v1651 = vmul.f32 %v1516, %v1557
    %v1652 = vmul.f32 %v1517, %v1557
    %v1653 = vmul.f32 %v1518, %v1557
    %v1654 = vmul.f32 %v1519, %v1557
    %v1655 = vmul.f32 %v1520, %v1557
    %v1656 = vmul.f32 %v1521, %v1557
    %v1657 = vmul.f32 %v1522, %v1557
    %v1658 = vmul.f32 %v1523, %v1557
    %v1659 = vmul.f32 %v1524, %v1557
    %v1660 = vmul.f32 %v1525, %v1557
    %v1661 = vmul.f32 %v1526, %v1557
    %v1662 = vmul.f32 %v1527, %v1557
    %v1663 = vmul.f32 %v1528, %v1557
    %v1664 = vmul.f32 %v1529, %v1557
    %v1665 = vmul.f32 %v1530, %v1557
    %v1666 = vmul.f32 %v1531, %v1557
    %v1667 = vmul.f32 %v1532, %v1557
    %v1668 = vmul.f32 %v1533, %v1557
    %v1669 = vmul.f32 %v1534, %v1557
    %v1670 = vmul.f32 %v1535, %v1557
    %v1671 = vmul.f32 %v1536, %v1557
    %v1672 = vmul.f32 %v1537, %v1557
    %v1673 = vmul.f32 %v1538, %v1557
    %v1674 = vmul.f32 %v1539, %v1557
    %v1675 = vmul.f32 %v1540, %v1557
    %v1676 = vmul.f32 %v1541, %v1557
    %v1677 = vmul.f32 %v1542, %v1557
    %v1678 = vmul.f32 %v1543, %v1557
    %v1679 = vmul.f32 %v1544, %v1557
    %v1680 = vmul.f32 %v1545, %v1557
    %v1681 = vmul.f32 %v1546, %v1557
    %v1682 = vmul.f32 %v1547, %v1557
    %v1683 = vmul.f32 %v1548, %v1557
    %v1684 = vmul.f32 %v1549, %v1557
    %v1685 = vmul.f32 %v1550, %v1557
    %v1686 = vmul.f32 %v1551, %v1557
    %v1687 = vsel %vm150, %v1559, 0.0
    %1688 = vadd.xlane.f32.xlu0 %v1687
    %v1689 = vpop.xlane.xlu0 %1688
    %v1690 = vsel %vm150, %v1560, 0.0
    %1691 = vadd.xlane.f32.xlu0 %v1690
    %v1692 = vpop.xlane.xlu0 %1691
    %v1693 = vsel %vm150, %v1561, 0.0
    %1694 = vadd.xlane.f32.xlu0 %v1693
    %v1695 = vpop.xlane.xlu0 %1694
    %v1696 = vsel %vm150, %v1562, 0.0
    %1697 = vadd.xlane.f32.xlu0 %v1696
    %v1698 = vpop.xlane.xlu0 %1697
    %v1699 = vsel %vm150, %v1563, 0.0
    %1700 = vadd.xlane.f32.xlu0 %v1699
    %v1701 = vpop.xlane.xlu0 %1700
    %v1702 = vsel %vm150, %v1564, 0.0
    %1703 = vadd.xlane.f32.xlu0 %v1702
    %v1704 = vpop.xlane.xlu0 %1703
    %v1705 = vsel %vm150, %v1565, 0.0
    %1706 = vadd.xlane.f32.xlu0 %v1705
    %v1707 = vpop.xlane.xlu0 %1706
    %v1708 = vsel %vm150, %v1566, 0.0
    %1709 = vadd.xlane.f32.xlu0 %v1708
    %v1710 = vpop.xlane.xlu0 %1709
    %v1711 = vsel %vm150, %v1567, 0.0
    %1712 = vadd.xlane.f32.xlu0 %v1711
    %v1713 = vpop.xlane.xlu0 %1712
    %v1714 = vsel %vm150, %v1568, 0.0
    %1715 = vadd.xlane.f32.xlu0 %v1714
    %v1716 = vpop.xlane.xlu0 %1715
    %v1717 = vsel %vm150, %v1569, 0.0
    %1718 = vadd.xlane.f32.xlu0 %v1717
    %v1719 = vpop.xlane.xlu0 %1718
    %v1720 = vsel %vm150, %v1570, 0.0
    %1721 = vadd.xlane.f32.xlu0 %v1720
    %v1722 = vpop.xlane.xlu0 %1721
    %v1723 = vsel %vm150, %v1571, 0.0
    %1724 = vadd.xlane.f32.xlu0 %v1723
    %v1725 = vpop.xlane.xlu0 %1724
    %v1726 = vsel %vm150, %v1572, 0.0
    %1727 = vadd.xlane.f32.xlu0 %v1726
    %v1728 = vpop.xlane.xlu0 %1727
    %v1729 = vsel %vm150, %v1573, 0.0
    %1730 = vadd.xlane.f32.xlu0 %v1729
    %v1731 = vpop.xlane.xlu0 %1730
    %v1732 = vsel %vm150, %v1574, 0.0
    %1733 = vadd.xlane.f32.xlu0 %v1732
    %v1734 = vpop.xlane.xlu0 %1733
    %v1735 = vsel %vm150, %v1575, 0.0
    %1736 = vadd.xlane.f32.xlu0 %v1735
    %v1737 = vpop.xlane.xlu0 %1736
    %v1738 = vsel %vm150, %v1576, 0.0
    %1739 = vadd.xlane.f32.xlu0 %v1738
    %v1740 = vpop.xlane.xlu0 %1739
    %v1741 = vsel %vm150, %v1577, 0.0
    %1742 = vadd.xlane.f32.xlu0 %v1741
    %v1743 = vpop.xlane.xlu0 %1742
    %v1744 = vsel %vm150, %v1578, 0.0
    %1745 = vadd.xlane.f32.xlu0 %v1744
    %v1746 = vpop.xlane.xlu0 %1745
    %v1747 = vsel %vm150, %v1579, 0.0
    %1748 = vadd.xlane.f32.xlu0 %v1747
    %v1749 = vpop.xlane.xlu0 %1748
    %v1750 = vsel %vm150, %v1580, 0.0
    %1751 = vadd.xlane.f32.xlu0 %v1750
    %v1752 = vpop.xlane.xlu0 %1751
    %v1753 = vsel %vm150, %v1581, 0.0
    %1754 = vadd.xlane.f32.xlu0 %v1753
    %v1755 = vpop.xlane.xlu0 %1754
    %v1756 = vsel %vm150, %v1582, 0.0
    %1757 = vadd.xlane.f32.xlu0 %v1756
    %v1758 = vpop.xlane.xlu0 %1757
    %v1759 = vsel %vm150, %v1583, 0.0
    %1760 = vadd.xlane.f32.xlu0 %v1759
    %v1761 = vpop.xlane.xlu0 %1760
    %v1762 = vsel %vm150, %v1584, 0.0
    %1763 = vadd.xlane.f32.xlu0 %v1762
    %v1764 = vpop.xlane.xlu0 %1763
    %v1765 = vsel %vm150, %v1585, 0.0
    %1766 = vadd.xlane.f32.xlu0 %v1765
    %v1767 = vpop.xlane.xlu0 %1766
    %v1768 = vsel %vm150, %v1586, 0.0
    %1769 = vadd.xlane.f32.xlu0 %v1768
    %v1770 = vpop.xlane.xlu0 %1769
    %v1771 = vsel %vm150, %v1587, 0.0
    %1772 = vadd.xlane.f32.xlu0 %v1771
    %v1773 = vpop.xlane.xlu0 %1772
    %v1774 = vsel %vm150, %v1588, 0.0
    %1775 = vadd.xlane.f32.xlu0 %v1774
    %v1776 = vpop.xlane.xlu0 %1775
    %v1777 = vsel %vm150, %v1589, 0.0
    %1778 = vadd.xlane.f32.xlu0 %v1777
    %v1779 = vpop.xlane.xlu0 %1778
    %v1780 = vsel %vm150, %v1590, 0.0
    %1781 = vadd.xlane.f32.xlu0 %v1780
    %v1782 = vpop.xlane.xlu0 %1781
    %v1783 = vsel %vm150, %v1591, 0.0
    %1784 = vadd.xlane.f32.xlu0 %v1783
    %v1785 = vpop.xlane.xlu0 %1784
    %v1786 = vsel %vm150, %v1592, 0.0
    %1787 = vadd.xlane.f32.xlu0 %v1786
    %v1788 = vpop.xlane.xlu0 %1787
    %v1789 = vsel %vm150, %v1593, 0.0
    %1790 = vadd.xlane.f32.xlu0 %v1789
    %v1791 = vpop.xlane.xlu0 %1790
    %v1792 = vsel %vm150, %v1594, 0.0
    %1793 = vadd.xlane.f32.xlu0 %v1792
    %v1794 = vpop.xlane.xlu0 %1793
    %v1795 = vsel %vm150, %v1595, 0.0
    %1796 = vadd.xlane.f32.xlu0 %v1795
    %v1797 = vpop.xlane.xlu0 %1796
    %v1798 = vsel %vm150, %v1596, 0.0
    %1799 = vadd.xlane.f32.xlu0 %v1798
    %v1800 = vpop.xlane.xlu0 %1799
    %v1801 = vsel %vm150, %v1597, 0.0
    %1802 = vadd.xlane.f32.xlu0 %v1801
    %v1803 = vpop.xlane.xlu0 %1802
    %v1804 = vsel %vm150, %v1598, 0.0
    %1805 = vadd.xlane.f32.xlu0 %v1804
    %v1806 = vpop.xlane.xlu0 %1805
    %v1807 = vsel %vm150, %v1599, 0.0
    %1808 = vadd.xlane.f32.xlu0 %v1807
    %v1809 = vpop.xlane.xlu0 %1808
    %v1810 = vsel %vm150, %v1600, 0.0
    %1811 = vadd.xlane.f32.xlu0 %v1810
    %v1812 = vpop.xlane.xlu0 %1811
    %v1813 = vsel %vm150, %v1601, 0.0
    %1814 = vadd.xlane.f32.xlu0 %v1813
    %v1815 = vpop.xlane.xlu0 %1814
    %v1816 = vsel %vm150, %v1602, 0.0
    %1817 = vadd.xlane.f32.xlu0 %v1816
    %v1818 = vpop.xlane.xlu0 %1817
    %v1819 = vsel %vm150, %v1603, 0.0
    %1820 = vadd.xlane.f32.xlu0 %v1819
    %v1821 = vpop.xlane.xlu0 %1820
    %v1822 = vsel %vm150, %v1604, 0.0
    %1823 = vadd.xlane.f32.xlu0 %v1822
    %v1824 = vpop.xlane.xlu0 %1823
    %v1825 = vsel %vm150, %v1605, 0.0
    %1826 = vadd.xlane.f32.xlu0 %v1825
    %v1827 = vpop.xlane.xlu0 %1826
    %v1828 = vsel %vm150, %v1606, 0.0
    %1829 = vadd.xlane.f32.xlu0 %v1828
    %v1830 = vpop.xlane.xlu0 %1829
    %v1831 = vsel %vm150, %v1607, 0.0
    %1832 = vadd.xlane.f32.xlu0 %v1831
    %v1833 = vpop.xlane.xlu0 %1832
    %v1834 = vsel %vm150, %v1608, 0.0
    %1835 = vadd.xlane.f32.xlu0 %v1834
    %v1836 = vpop.xlane.xlu0 %1835
    %v1837 = vsel %vm150, %v1609, 0.0
    %1838 = vadd.xlane.f32.xlu0 %v1837
    %v1839 = vpop.xlane.xlu0 %1838
    %v1840 = vsel %vm150, %v1610, 0.0
    %1841 = vadd.xlane.f32.xlu0 %v1840
    %v1842 = vpop.xlane.xlu0 %1841
    %v1843 = vsel %vm150, %v1611, 0.0
    %1844 = vadd.xlane.f32.xlu0 %v1843
    %v1845 = vpop.xlane.xlu0 %1844
    %v1846 = vsel %vm150, %v1612, 0.0
    %1847 = vadd.xlane.f32.xlu0 %v1846
    %v1848 = vpop.xlane.xlu0 %1847
    %v1849 = vsel %vm150, %v1613, 0.0
    %1850 = vadd.xlane.f32.xlu0 %v1849
    %v1851 = vpop.xlane.xlu0 %1850
    %v1852 = vsel %vm150, %v1614, 0.0
    %1853 = vadd.xlane.f32.xlu0 %v1852
    %v1854 = vpop.xlane.xlu0 %1853
    %v1855 = vsel %vm150, %v1615, 0.0
    %1856 = vadd.xlane.f32.xlu0 %v1855
    %v1857 = vpop.xlane.xlu0 %1856
    %v1858 = vsel %vm150, %v1616, 0.0
    %1859 = vadd.xlane.f32.xlu0 %v1858
    %v1860 = vpop.xlane.xlu0 %1859
    %v1861 = vsel %vm150, %v1617, 0.0
    %1862 = vadd.xlane.f32.xlu0 %v1861
    %v1863 = vpop.xlane.xlu0 %1862
    %v1864 = vsel %vm150, %v1618, 0.0
    %1865 = vadd.xlane.f32.xlu0 %v1864
    %v1866 = vpop.xlane.xlu0 %1865
    %v1867 = vsel %vm150, %v1619, 0.0
    %1868 = vadd.xlane.f32.xlu0 %v1867
    %v1869 = vpop.xlane.xlu0 %1868
    %v1870 = vsel %vm150, %v1620, 0.0
    %1871 = vadd.xlane.f32.xlu0 %v1870
    %v1872 = vpop.xlane.xlu0 %1871
    %v1873 = vsel %vm150, %v1621, 0.0
    %1874 = vadd.xlane.f32.xlu0 %v1873
    %v1875 = vpop.xlane.xlu0 %1874
    %v1876 = vsel %vm150, %v1622, 0.0
    %1877 = vadd.xlane.f32.xlu0 %v1876
    %v1878 = vpop.xlane.xlu0 %1877
    %v1879 = vsel %vm150, %v1623, 0.0
    %1880 = vadd.xlane.f32.xlu0 %v1879
    %v1881 = vpop.xlane.xlu0 %1880
    %v1882 = vsel %vm150, %v1624, 0.0
    %1883 = vadd.xlane.f32.xlu0 %v1882
    %v1884 = vpop.xlane.xlu0 %1883
    %v1885 = vsel %vm150, %v1625, 0.0
    %1886 = vadd.xlane.f32.xlu0 %v1885
    %v1887 = vpop.xlane.xlu0 %1886
    %v1888 = vsel %vm150, %v1626, 0.0
    %1889 = vadd.xlane.f32.xlu0 %v1888
    %v1890 = vpop.xlane.xlu0 %1889
    %v1891 = vsel %vm150, %v1627, 0.0
    %1892 = vadd.xlane.f32.xlu0 %v1891
    %v1893 = vpop.xlane.xlu0 %1892
    %v1894 = vsel %vm150, %v1628, 0.0
    %1895 = vadd.xlane.f32.xlu0 %v1894
    %v1896 = vpop.xlane.xlu0 %1895
    %v1897 = vsel %vm150, %v1629, 0.0
    %1898 = vadd.xlane.f32.xlu0 %v1897
    %v1899 = vpop.xlane.xlu0 %1898
    %v1900 = vsel %vm150, %v1630, 0.0
    %1901 = vadd.xlane.f32.xlu0 %v1900
    %v1902 = vpop.xlane.xlu0 %1901
    %v1903 = vsel %vm150, %v1631, 0.0
    %1904 = vadd.xlane.f32.xlu0 %v1903
    %v1905 = vpop.xlane.xlu0 %1904
    %v1906 = vsel %vm150, %v1632, 0.0
    %1907 = vadd.xlane.f32.xlu0 %v1906
    %v1908 = vpop.xlane.xlu0 %1907
    %v1909 = vsel %vm150, %v1633, 0.0
    %1910 = vadd.xlane.f32.xlu0 %v1909
    %v1911 = vpop.xlane.xlu0 %1910
    %v1912 = vsel %vm150, %v1634, 0.0
    %1913 = vadd.xlane.f32.xlu0 %v1912
    %v1914 = vpop.xlane.xlu0 %1913
    %v1915 = vsel %vm150, %v1635, 0.0
    %1916 = vadd.xlane.f32.xlu0 %v1915
    %v1917 = vpop.xlane.xlu0 %1916
    %v1918 = vsel %vm150, %v1636, 0.0
    %1919 = vadd.xlane.f32.xlu0 %v1918
    %v1920 = vpop.xlane.xlu0 %1919
    %v1921 = vsel %vm150, %v1637, 0.0
    %1922 = vadd.xlane.f32.xlu0 %v1921
    %v1923 = vpop.xlane.xlu0 %1922
    %v1924 = vsel %vm150, %v1638, 0.0
    %1925 = vadd.xlane.f32.xlu0 %v1924
    %v1926 = vpop.xlane.xlu0 %1925
    %v1927 = vsel %vm150, %v1639, 0.0
    %1928 = vadd.xlane.f32.xlu0 %v1927
    %v1929 = vpop.xlane.xlu0 %1928
    %v1930 = vsel %vm150, %v1640, 0.0
    %1931 = vadd.xlane.f32.xlu0 %v1930
    %v1932 = vpop.xlane.xlu0 %1931
    %v1933 = vsel %vm150, %v1641, 0.0
    %1934 = vadd.xlane.f32.xlu0 %v1933
    %v1935 = vpop.xlane.xlu0 %1934
    %v1936 = vsel %vm150, %v1642, 0.0
    %1937 = vadd.xlane.f32.xlu0 %v1936
    %v1938 = vpop.xlane.xlu0 %1937
    %v1939 = vsel %vm150, %v1643, 0.0
    %1940 = vadd.xlane.f32.xlu0 %v1939
    %v1941 = vpop.xlane.xlu0 %1940
    %v1942 = vsel %vm150, %v1644, 0.0
    %1943 = vadd.xlane.f32.xlu0 %v1942
    %v1944 = vpop.xlane.xlu0 %1943
    %v1945 = vsel %vm150, %v1645, 0.0
    %1946 = vadd.xlane.f32.xlu0 %v1945
    %v1947 = vpop.xlane.xlu0 %1946
    %v1948 = vsel %vm150, %v1646, 0.0
    %1949 = vadd.xlane.f32.xlu0 %v1948
    %v1950 = vpop.xlane.xlu0 %1949
    %v1951 = vsel %vm150, %v1647, 0.0
    %1952 = vadd.xlane.f32.xlu0 %v1951
    %v1953 = vpop.xlane.xlu0 %1952
    %v1954 = vsel %vm150, %v1648, 0.0
    %1955 = vadd.xlane.f32.xlu0 %v1954
    %v1956 = vpop.xlane.xlu0 %1955
    %v1957 = vsel %vm150, %v1649, 0.0
    %1958 = vadd.xlane.f32.xlu0 %v1957
    %v1959 = vpop.xlane.xlu0 %1958
    %v1960 = vsel %vm150, %v1650, 0.0
    %1961 = vadd.xlane.f32.xlu0 %v1960
    %v1962 = vpop.xlane.xlu0 %1961
    %v1963 = vsel %vm150, %v1651, 0.0
    %1964 = vadd.xlane.f32.xlu0 %v1963
    %v1965 = vpop.xlane.xlu0 %1964
    %v1966 = vsel %vm150, %v1652, 0.0
    %1967 = vadd.xlane.f32.xlu0 %v1966
    %v1968 = vpop.xlane.xlu0 %1967
    %v1969 = vsel %vm150, %v1653, 0.0
    %1970 = vadd.xlane.f32.xlu0 %v1969
    %v1971 = vpop.xlane.xlu0 %1970
    %v1972 = vsel %vm150, %v1654, 0.0
    %1973 = vadd.xlane.f32.xlu0 %v1972
    %v1974 = vpop.xlane.xlu0 %1973
    %v1975 = vsel %vm150, %v1655, 0.0
    %1976 = vadd.xlane.f32.xlu0 %v1975
    %v1977 = vpop.xlane.xlu0 %1976
    %v1978 = vsel %vm150, %v1656, 0.0
    %1979 = vadd.xlane.f32.xlu0 %v1978
    %v1980 = vpop.xlane.xlu0 %1979
    %v1981 = vsel %vm150, %v1657, 0.0
    %1982 = vadd.xlane.f32.xlu0 %v1981
    %v1983 = vpop.xlane.xlu0 %1982
    %v1984 = vsel %vm150, %v1658, 0.0
    %1985 = vadd.xlane.f32.xlu0 %v1984
    %v1986 = vpop.xlane.xlu0 %1985
    %v1987 = vsel %vm150, %v1659, 0.0
    %1988 = vadd.xlane.f32.xlu0 %v1987
    %v1989 = vpop.xlane.xlu0 %1988
    %v1990 = vsel %vm150, %v1660, 0.0
    %1991 = vadd.xlane.f32.xlu0 %v1990
    %v1992 = vpop.xlane.xlu0 %1991
    %v1993 = vsel %vm150, %v1661, 0.0
    %1994 = vadd.xlane.f32.xlu0 %v1993
    %v1995 = vpop.xlane.xlu0 %1994
    %v1996 = vsel %vm150, %v1662, 0.0
    %1997 = vadd.xlane.f32.xlu0 %v1996
    %v1998 = vpop.xlane.xlu0 %1997
    %v1999 = vsel %vm150, %v1663, 0.0
    %2000 = vadd.xlane.f32.xlu0 %v1999
    %v2001 = vpop.xlane.xlu0 %2000
    %v2002 = vsel %vm150, %v1664, 0.0
    %2003 = vadd.xlane.f32.xlu0 %v2002
    %v2004 = vpop.xlane.xlu0 %2003
    %v2005 = vsel %vm150, %v1665, 0.0
    %2006 = vadd.xlane.f32.xlu0 %v2005
    %v2007 = vpop.xlane.xlu0 %2006
    %v2008 = vsel %vm150, %v1666, 0.0
    %2009 = vadd.xlane.f32.xlu0 %v2008
    %v2010 = vpop.xlane.xlu0 %2009
    %v2011 = vsel %vm150, %v1667, 0.0
    %2012 = vadd.xlane.f32.xlu0 %v2011
    %v2013 = vpop.xlane.xlu0 %2012
    %v2014 = vsel %vm150, %v1668, 0.0
    %2015 = vadd.xlane.f32.xlu0 %v2014
    %v2016 = vpop.xlane.xlu0 %2015
    %v2017 = vsel %vm150, %v1669, 0.0
    %2018 = vadd.xlane.f32.xlu0 %v2017
    %v2019 = vpop.xlane.xlu0 %2018
    %v2020 = vsel %vm150, %v1670, 0.0
    %2021 = vadd.xlane.f32.xlu0 %v2020
    %v2022 = vpop.xlane.xlu0 %2021
    %v2023 = vsel %vm150, %v1671, 0.0
    %2024 = vadd.xlane.f32.xlu0 %v2023
    %v2025 = vpop.xlane.xlu0 %2024
    %v2026 = vsel %vm150, %v1672, 0.0
    %2027 = vadd.xlane.f32.xlu0 %v2026
    %v2028 = vpop.xlane.xlu0 %2027
    %v2029 = vsel %vm150, %v1673, 0.0
    %2030 = vadd.xlane.f32.xlu0 %v2029
    %v2031 = vpop.xlane.xlu0 %2030
    %v2032 = vsel %vm150, %v1674, 0.0
    %2033 = vadd.xlane.f32.xlu0 %v2032
    %v2034 = vpop.xlane.xlu0 %2033
    %v2035 = vsel %vm150, %v1675, 0.0
    %2036 = vadd.xlane.f32.xlu0 %v2035
    %v2037 = vpop.xlane.xlu0 %2036
    %v2038 = vsel %vm150, %v1676, 0.0
    %2039 = vadd.xlane.f32.xlu0 %v2038
    %v2040 = vpop.xlane.xlu0 %2039
    %v2041 = vsel %vm150, %v1677, 0.0
    %2042 = vadd.xlane.f32.xlu0 %v2041
    %v2043 = vpop.xlane.xlu0 %2042
    %v2044 = vsel %vm150, %v1678, 0.0
    %2045 = vadd.xlane.f32.xlu0 %v2044
    %v2046 = vpop.xlane.xlu0 %2045
    %v2047 = vsel %vm150, %v1679, 0.0
    %2048 = vadd.xlane.f32.xlu0 %v2047
    %v2049 = vpop.xlane.xlu0 %2048
    %v2050 = vsel %vm150, %v1680, 0.0
    %2051 = vadd.xlane.f32.xlu0 %v2050
    %v2052 = vpop.xlane.xlu0 %2051
    %v2053 = vsel %vm150, %v1681, 0.0
    %2054 = vadd.xlane.f32.xlu0 %v2053
    %v2055 = vpop.xlane.xlu0 %2054
    %v2056 = vsel %vm150, %v1682, 0.0
    %2057 = vadd.xlane.f32.xlu0 %v2056
    %v2058 = vpop.xlane.xlu0 %2057
    %v2059 = vsel %vm150, %v1683, 0.0
    %2060 = vadd.xlane.f32.xlu0 %v2059
    %v2061 = vpop.xlane.xlu0 %2060
    %v2062 = vsel %vm150, %v1684, 0.0
    %2063 = vadd.xlane.f32.xlu0 %v2062
    %v2064 = vpop.xlane.xlu0 %2063
    %v2065 = vsel %vm150, %v1685, 0.0
    %2066 = vadd.xlane.f32.xlu0 %v2065
    %v2067 = vpop.xlane.xlu0 %2066
    %v2068 = vsel %vm150, %v1686, 0.0
    %2069 = vadd.xlane.f32.xlu0 %v2068
    %v2070 = vpop.xlane.xlu0 %2069
    %v2071 = vlaneseq
    %v2072 = vand.u32 %v2071, 127
    %vm2073 = vcmp.lt.s32.totalorder %v2072, 8
    %v2202 = vlaneseq
    %v2203 = vshrl.u32 %v2202, 7
    %v2204 = vsub.s32 %v2072, %v2203
    %v2205 = vrot.slane %v1689, %v2204
    %v2206 = vadd.s32 %v2072, 4294967288
    %v2207 = vlaneseq
    %v2208 = vshrl.u32 %v2207, 7
    %v2209 = vsub.s32 %v2206, %v2208
    %v2210 = vrot.slane %v1692, %v2209
    %vm2211 = vcmask 130112
    %v2212 = vsel %vm2211, %v2210, %v2205
    %v2213 = vadd.s32 %v2072, 4294967280
    %v2214 = vlaneseq
    %v2215 = vshrl.u32 %v2214, 7
    %v2216 = vsub.s32 %v2213, %v2215
    %v2217 = vrot.slane %v1695, %v2216
    %vm2218 = vcmask 195712
    %v2219 = vsel %vm2218, %v2217, %v2212
    %v2220 = vadd.s32 %v2072, 4294967272
    %v2221 = vlaneseq
    %v2222 = vshrl.u32 %v2221, 7
    %v2223 = vsub.s32 %v2220, %v2222
    %v2224 = vrot.slane %v1698, %v2223
    %vm2225 = vcmask 261312
    %v2226 = vsel %vm2225, %v2224, %v2219
    %v2227 = vadd.s32 %v2072, 4294967264
    %v2228 = vlaneseq
    %v2229 = vshrl.u32 %v2228, 7
    %v2230 = vsub.s32 %v2227, %v2229
    %v2231 = vrot.slane %v1701, %v2230
    %vm2232 = vcmask 326912
    %v2233 = vsel %vm2232, %v2231, %v2226
    %v2234 = vadd.s32 %v2072, 4294967256
    %v2235 = vlaneseq
    %v2236 = vshrl.u32 %v2235, 7
    %v2237 = vsub.s32 %v2234, %v2236
    %v2238 = vrot.slane %v1704, %v2237
    %vm2239 = vcmask 392512
    %v2240 = vsel %vm2239, %v2238, %v2233
    %v2241 = vadd.s32 %v2072, 4294967248
    %v2242 = vlaneseq
    %v2243 = vshrl.u32 %v2242, 7
    %v2244 = vsub.s32 %v2241, %v2243
    %v2245 = vrot.slane %v1707, %v2244
    %vm2246 = vcmask 458112
    %v2247 = vsel %vm2246, %v2245, %v2240
    %v2248 = vadd.s32 %v2072, 4294967240
    %v2249 = vlaneseq
    %v2250 = vshrl.u32 %v2249, 7
    %v2251 = vsub.s32 %v2248, %v2250
    %v2252 = vrot.slane %v1710, %v2251
    %vm2253 = vcmask 523712
    %v2254 = vsel %vm2253, %v2252, %v2247
    %v2255 = vadd.s32 %v2072, 4294967232
    %v2256 = vlaneseq
    %v2257 = vshrl.u32 %v2256, 7
    %v2258 = vsub.s32 %v2255, %v2257
    %v2259 = vrot.slane %v1713, %v2258
    %vm2260 = vcmask 589312
    %v2261 = vsel %vm2260, %v2259, %v2254
    %v2262 = vadd.s32 %v2072, 4294967224
    %v2263 = vlaneseq
    %v2264 = vshrl.u32 %v2263, 7
    %v2265 = vsub.s32 %v2262, %v2264
    %v2266 = vrot.slane %v1716, %v2265
    %vm2267 = vcmask 654912
    %v2268 = vsel %vm2267, %v2266, %v2261
    %v2269 = vadd.s32 %v2072, 4294967216
    %v2270 = vlaneseq
    %v2271 = vshrl.u32 %v2270, 7
    %v2272 = vsub.s32 %v2269, %v2271
    %v2273 = vrot.slane %v1719, %v2272
    %vm2274 = vcmask 720512
    %v2275 = vsel %vm2274, %v2273, %v2268
    %v2276 = vadd.s32 %v2072, 4294967208
    %v2277 = vlaneseq
    %v2278 = vshrl.u32 %v2277, 7
    %v2279 = vsub.s32 %v2276, %v2278
    %v2280 = vrot.slane %v1722, %v2279
    %vm2281 = vcmask 786112
    %v2282 = vsel %vm2281, %v2280, %v2275
    %v2283 = vadd.s32 %v2072, 4294967200
    %v2284 = vlaneseq
    %v2285 = vshrl.u32 %v2284, 7
    %v2286 = vsub.s32 %v2283, %v2285
    %v2287 = vrot.slane %v1725, %v2286
    %vm2288 = vcmask 851712
    %v2289 = vsel %vm2288, %v2287, %v2282
    %v2290 = vadd.s32 %v2072, 4294967192
    %v2291 = vlaneseq
    %v2292 = vshrl.u32 %v2291, 7
    %v2293 = vsub.s32 %v2290, %v2292
    %v2294 = vrot.slane %v1728, %v2293
    %vm2295 = vcmask 917312
    %v2296 = vsel %vm2295, %v2294, %v2289
    %v2297 = vadd.s32 %v2072, 4294967184
    %v2298 = vlaneseq
    %v2299 = vshrl.u32 %v2298, 7
    %v2300 = vsub.s32 %v2297, %v2299
    %v2301 = vrot.slane %v1731, %v2300
    %vm2302 = vcmask 982912
    %v2303 = vsel %vm2302, %v2301, %v2296
    %v2304 = vadd.s32 %v2072, 4294967176
    %v2305 = vlaneseq
    %v2306 = vshrl.u32 %v2305, 7
    %v2307 = vsub.s32 %v2304, %v2306
    %v2308 = vrot.slane %v1734, %v2307
    %vm2309 = vcmask 1048512
    %v2310 = vsel %vm2309, %v2308, %v2303
    %v2311 = vlaneseq
    %v2312 = vshrl.u32 %v2311, 7
    %v2313 = vsub.s32 %v2072, %v2312
    %v2314 = vrot.slane %v1737, %v2313
    %v2315 = vlaneseq
    %v2316 = vshrl.u32 %v2315, 7
    %v2317 = vsub.s32 %v2206, %v2316
    %v2318 = vrot.slane %v1740, %v2317
    %v2319 = vsel %vm2211, %v2318, %v2314
    %v2320 = vlaneseq
    %v2321 = vshrl.u32 %v2320, 7
    %v2322 = vsub.s32 %v2213, %v2321
    %v2323 = vrot.slane %v1743, %v2322
    %v2324 = vsel %vm2218, %v2323, %v2319
    %v2325 = vlaneseq
    %v2326 = vshrl.u32 %v2325, 7
    %v2327 = vsub.s32 %v2220, %v2326
    %v2328 = vrot.slane %v1746, %v2327
    %v2329 = vsel %vm2225, %v2328, %v2324
    %v2330 = vlaneseq
    %v2331 = vshrl.u32 %v2330, 7
    %v2332 = vsub.s32 %v2227, %v2331
    %v2333 = vrot.slane %v1749, %v2332
    %v2334 = vsel %vm2232, %v2333, %v2329
    %v2335 = vlaneseq
    %v2336 = vshrl.u32 %v2335, 7
    %v2337 = vsub.s32 %v2234, %v2336
    %v2338 = vrot.slane %v1752, %v2337
    %v2339 = vsel %vm2239, %v2338, %v2334
    %v2340 = vlaneseq
    %v2341 = vshrl.u32 %v2340, 7
    %v2342 = vsub.s32 %v2241, %v2341
    %v2343 = vrot.slane %v1755, %v2342
    %v2344 = vsel %vm2246, %v2343, %v2339
    %v2345 = vlaneseq
    %v2346 = vshrl.u32 %v2345, 7
    %v2347 = vsub.s32 %v2248, %v2346
    %v2348 = vrot.slane %v1758, %v2347
    %v2349 = vsel %vm2253, %v2348, %v2344
    %v2350 = vlaneseq
    %v2351 = vshrl.u32 %v2350, 7
    %v2352 = vsub.s32 %v2255, %v2351
    %v2353 = vrot.slane %v1761, %v2352
    %v2354 = vsel %vm2260, %v2353, %v2349
    %v2355 = vlaneseq
    %v2356 = vshrl.u32 %v2355, 7
    %v2357 = vsub.s32 %v2262, %v2356
    %v2358 = vrot.slane %v1764, %v2357
    %v2359 = vsel %vm2267, %v2358, %v2354
    %v2360 = vlaneseq
    %v2361 = vshrl.u32 %v2360, 7
    %v2362 = vsub.s32 %v2269, %v2361
    %v2363 = vrot.slane %v1767, %v2362
    %v2364 = vsel %vm2274, %v2363, %v2359
    %v2365 = vlaneseq
    %v2366 = vshrl.u32 %v2365, 7
    %v2367 = vsub.s32 %v2276, %v2366
    %v2368 = vrot.slane %v1770, %v2367
    %v2369 = vsel %vm2281, %v2368, %v2364
    %v2370 = vlaneseq
    %v2371 = vshrl.u32 %v2370, 7
    %v2372 = vsub.s32 %v2283, %v2371
    %v2373 = vrot.slane %v1773, %v2372
    %v2374 = vsel %vm2288, %v2373, %v2369
    %v2375 = vlaneseq
    %v2376 = vshrl.u32 %v2375, 7
    %v2377 = vsub.s32 %v2290, %v2376
    %v2378 = vrot.slane %v1776, %v2377
    %v2379 = vsel %vm2295, %v2378, %v2374
    %v2380 = vlaneseq
    %v2381 = vshrl.u32 %v2380, 7
    %v2382 = vsub.s32 %v2297, %v2381
    %v2383 = vrot.slane %v1779, %v2382
    %v2384 = vsel %vm2302, %v2383, %v2379
    %v2385 = vlaneseq
    %v2386 = vshrl.u32 %v2385, 7
    %v2387 = vsub.s32 %v2304, %v2386
    %v2388 = vrot.slane %v1782, %v2387
    %v2389 = vsel %vm2309, %v2388, %v2384
    %v2390 = vlaneseq
    %v2391 = vshrl.u32 %v2390, 7
    %v2392 = vsub.s32 %v2072, %v2391
    %v2393 = vrot.slane %v1785, %v2392
    %v2394 = vlaneseq
    %v2395 = vshrl.u32 %v2394, 7
    %v2396 = vsub.s32 %v2206, %v2395
    %v2397 = vrot.slane %v1788, %v2396
    %v2398 = vsel %vm2211, %v2397, %v2393
    %v2399 = vlaneseq
    %v2400 = vshrl.u32 %v2399, 7
    %v2401 = vsub.s32 %v2213, %v2400
    %v2402 = vrot.slane %v1791, %v2401
    %v2403 = vsel %vm2218, %v2402, %v2398
    %v2404 = vlaneseq
    %v2405 = vshrl.u32 %v2404, 7
    %v2406 = vsub.s32 %v2220, %v2405
    %v2407 = vrot.slane %v1794, %v2406
    %v2408 = vsel %vm2225, %v2407, %v2403
    %v2409 = vlaneseq
    %v2410 = vshrl.u32 %v2409, 7
    %v2411 = vsub.s32 %v2227, %v2410
    %v2412 = vrot.slane %v1797, %v2411
    %v2413 = vsel %vm2232, %v2412, %v2408
    %v2414 = vlaneseq
    %v2415 = vshrl.u32 %v2414, 7
    %v2416 = vsub.s32 %v2234, %v2415
    %v2417 = vrot.slane %v1800, %v2416
    %v2418 = vsel %vm2239, %v2417, %v2413
    %v2419 = vlaneseq
    %v2420 = vshrl.u32 %v2419, 7
    %v2421 = vsub.s32 %v2241, %v2420
    %v2422 = vrot.slane %v1803, %v2421
    %v2423 = vsel %vm2246, %v2422, %v2418
    %v2424 = vlaneseq
    %v2425 = vshrl.u32 %v2424, 7
    %v2426 = vsub.s32 %v2248, %v2425
    %v2427 = vrot.slane %v1806, %v2426
    %v2428 = vsel %vm2253, %v2427, %v2423
    %v2429 = vlaneseq
    %v2430 = vshrl.u32 %v2429, 7
    %v2431 = vsub.s32 %v2255, %v2430
    %v2432 = vrot.slane %v1809, %v2431
    %v2433 = vsel %vm2260, %v2432, %v2428
    %v2434 = vlaneseq
    %v2435 = vshrl.u32 %v2434, 7
    %v2436 = vsub.s32 %v2262, %v2435
    %v2437 = vrot.slane %v1812, %v2436
    %v2438 = vsel %vm2267, %v2437, %v2433
    %v2439 = vlaneseq
    %v2440 = vshrl.u32 %v2439, 7
    %v2441 = vsub.s32 %v2269, %v2440
    %v2442 = vrot.slane %v1815, %v2441
    %v2443 = vsel %vm2274, %v2442, %v2438
    %v2444 = vlaneseq
    %v2445 = vshrl.u32 %v2444, 7
    %v2446 = vsub.s32 %v2276, %v2445
    %v2447 = vrot.slane %v1818, %v2446
    %v2448 = vsel %vm2281, %v2447, %v2443
    %v2449 = vlaneseq
    %v2450 = vshrl.u32 %v2449, 7
    %v2451 = vsub.s32 %v2283, %v2450
    %v2452 = vrot.slane %v1821, %v2451
    %v2453 = vsel %vm2288, %v2452, %v2448
    %v2454 = vlaneseq
    %v2455 = vshrl.u32 %v2454, 7
    %v2456 = vsub.s32 %v2290, %v2455
    %v2457 = vrot.slane %v1824, %v2456
    %v2458 = vsel %vm2295, %v2457, %v2453
    %v2459 = vlaneseq
    %v2460 = vshrl.u32 %v2459, 7
    %v2461 = vsub.s32 %v2297, %v2460
    %v2462 = vrot.slane %v1827, %v2461
    %v2463 = vsel %vm2302, %v2462, %v2458
    %v2464 = vlaneseq
    %v2465 = vshrl.u32 %v2464, 7
    %v2466 = vsub.s32 %v2304, %v2465
    %v2467 = vrot.slane %v1830, %v2466
    %v2468 = vsel %vm2309, %v2467, %v2463
    %v2469 = vlaneseq
    %v2470 = vshrl.u32 %v2469, 7
    %v2471 = vsub.s32 %v2072, %v2470
    %v2472 = vrot.slane %v1833, %v2471
    %v2473 = vlaneseq
    %v2474 = vshrl.u32 %v2473, 7
    %v2475 = vsub.s32 %v2206, %v2474
    %v2476 = vrot.slane %v1836, %v2475
    %v2477 = vsel %vm2211, %v2476, %v2472
    %v2478 = vlaneseq
    %v2479 = vshrl.u32 %v2478, 7
    %v2480 = vsub.s32 %v2213, %v2479
    %v2481 = vrot.slane %v1839, %v2480
    %v2482 = vsel %vm2218, %v2481, %v2477
    %v2483 = vlaneseq
    %v2484 = vshrl.u32 %v2483, 7
    %v2485 = vsub.s32 %v2220, %v2484
    %v2486 = vrot.slane %v1842, %v2485
    %v2487 = vsel %vm2225, %v2486, %v2482
    %v2488 = vlaneseq
    %v2489 = vshrl.u32 %v2488, 7
    %v2490 = vsub.s32 %v2227, %v2489
    %v2491 = vrot.slane %v1845, %v2490
    %v2492 = vsel %vm2232, %v2491, %v2487
    %v2493 = vlaneseq
    %v2494 = vshrl.u32 %v2493, 7
    %v2495 = vsub.s32 %v2234, %v2494
    %v2496 = vrot.slane %v1848, %v2495
    %v2497 = vsel %vm2239, %v2496, %v2492
    %v2498 = vlaneseq
    %v2499 = vshrl.u32 %v2498, 7
    %v2500 = vsub.s32 %v2241, %v2499
    %v2501 = vrot.slane %v1851, %v2500
    %v2502 = vsel %vm2246, %v2501, %v2497
    %v2503 = vlaneseq
    %v2504 = vshrl.u32 %v2503, 7
    %v2505 = vsub.s32 %v2248, %v2504
    %v2506 = vrot.slane %v1854, %v2505
    %v2507 = vsel %vm2253, %v2506, %v2502
    %v2508 = vlaneseq
    %v2509 = vshrl.u32 %v2508, 7
    %v2510 = vsub.s32 %v2255, %v2509
    %v2511 = vrot.slane %v1857, %v2510
    %v2512 = vsel %vm2260, %v2511, %v2507
    %v2513 = vlaneseq
    %v2514 = vshrl.u32 %v2513, 7
    %v2515 = vsub.s32 %v2262, %v2514
    %v2516 = vrot.slane %v1860, %v2515
    %v2517 = vsel %vm2267, %v2516, %v2512
    %v2518 = vlaneseq
    %v2519 = vshrl.u32 %v2518, 7
    %v2520 = vsub.s32 %v2269, %v2519
    %v2521 = vrot.slane %v1863, %v2520
    %v2522 = vsel %vm2274, %v2521, %v2517
    %v2523 = vlaneseq
    %v2524 = vshrl.u32 %v2523, 7
    %v2525 = vsub.s32 %v2276, %v2524
    %v2526 = vrot.slane %v1866, %v2525
    %v2527 = vsel %vm2281, %v2526, %v2522
    %v2528 = vlaneseq
    %v2529 = vshrl.u32 %v2528, 7
    %v2530 = vsub.s32 %v2283, %v2529
    %v2531 = vrot.slane %v1869, %v2530
    %v2532 = vsel %vm2288, %v2531, %v2527
    %v2533 = vlaneseq
    %v2534 = vshrl.u32 %v2533, 7
    %v2535 = vsub.s32 %v2290, %v2534
    %v2536 = vrot.slane %v1872, %v2535
    %v2537 = vsel %vm2295, %v2536, %v2532
    %v2538 = vlaneseq
    %v2539 = vshrl.u32 %v2538, 7
    %v2540 = vsub.s32 %v2297, %v2539
    %v2541 = vrot.slane %v1875, %v2540
    %v2542 = vsel %vm2302, %v2541, %v2537
    %v2543 = vlaneseq
    %v2544 = vshrl.u32 %v2543, 7
    %v2545 = vsub.s32 %v2304, %v2544
    %v2546 = vrot.slane %v1878, %v2545
    %v2547 = vsel %vm2309, %v2546, %v2542
    %v2548 = vlaneseq
    %v2549 = vshrl.u32 %v2548, 7
    %v2550 = vsub.s32 %v2072, %v2549
    %v2551 = vrot.slane %v1881, %v2550
    %v2552 = vlaneseq
    %v2553 = vshrl.u32 %v2552, 7
    %v2554 = vsub.s32 %v2206, %v2553
    %v2555 = vrot.slane %v1884, %v2554
    %v2556 = vsel %vm2211, %v2555, %v2551
    %v2557 = vlaneseq
    %v2558 = vshrl.u32 %v2557, 7
    %v2559 = vsub.s32 %v2213, %v2558
    %v2560 = vrot.slane %v1887, %v2559
    %v2561 = vsel %vm2218, %v2560, %v2556
    %v2562 = vlaneseq
    %v2563 = vshrl.u32 %v2562, 7
    %v2564 = vsub.s32 %v2220, %v2563
    %v2565 = vrot.slane %v1890, %v2564
    %v2566 = vsel %vm2225, %v2565, %v2561
    %v2567 = vlaneseq
    %v2568 = vshrl.u32 %v2567, 7
    %v2569 = vsub.s32 %v2227, %v2568
    %v2570 = vrot.slane %v1893, %v2569
    %v2571 = vsel %vm2232, %v2570, %v2566
    %v2572 = vlaneseq
    %v2573 = vshrl.u32 %v2572, 7
    %v2574 = vsub.s32 %v2234, %v2573
    %v2575 = vrot.slane %v1896, %v2574
    %v2576 = vsel %vm2239, %v2575, %v2571
    %v2577 = vlaneseq
    %v2578 = vshrl.u32 %v2577, 7
    %v2579 = vsub.s32 %v2241, %v2578
    %v2580 = vrot.slane %v1899, %v2579
    %v2581 = vsel %vm2246, %v2580, %v2576
    %v2582 = vlaneseq
    %v2583 = vshrl.u32 %v2582, 7
    %v2584 = vsub.s32 %v2248, %v2583
    %v2585 = vrot.slane %v1902, %v2584
    %v2586 = vsel %vm2253, %v2585, %v2581
    %v2587 = vlaneseq
    %v2588 = vshrl.u32 %v2587, 7
    %v2589 = vsub.s32 %v2255, %v2588
    %v2590 = vrot.slane %v1905, %v2589
    %v2591 = vsel %vm2260, %v2590, %v2586
    %v2592 = vlaneseq
    %v2593 = vshrl.u32 %v2592, 7
    %v2594 = vsub.s32 %v2262, %v2593
    %v2595 = vrot.slane %v1908, %v2594
    %v2596 = vsel %vm2267, %v2595, %v2591
    %v2597 = vlaneseq
    %v2598 = vshrl.u32 %v2597, 7
    %v2599 = vsub.s32 %v2269, %v2598
    %v2600 = vrot.slane %v1911, %v2599
    %v2601 = vsel %vm2274, %v2600, %v2596
    %v2602 = vlaneseq
    %v2603 = vshrl.u32 %v2602, 7
    %v2604 = vsub.s32 %v2276, %v2603
    %v2605 = vrot.slane %v1914, %v2604
    %v2606 = vsel %vm2281, %v2605, %v2601
    %v2607 = vlaneseq
    %v2608 = vshrl.u32 %v2607, 7
    %v2609 = vsub.s32 %v2283, %v2608
    %v2610 = vrot.slane %v1917, %v2609
    %v2611 = vsel %vm2288, %v2610, %v2606
    %v2612 = vlaneseq
    %v2613 = vshrl.u32 %v2612, 7
    %v2614 = vsub.s32 %v2290, %v2613
    %v2615 = vrot.slane %v1920, %v2614
    %v2616 = vsel %vm2295, %v2615, %v2611
    %v2617 = vlaneseq
    %v2618 = vshrl.u32 %v2617, 7
    %v2619 = vsub.s32 %v2297, %v2618
    %v2620 = vrot.slane %v1923, %v2619
    %v2621 = vsel %vm2302, %v2620, %v2616
    %v2622 = vlaneseq
    %v2623 = vshrl.u32 %v2622, 7
    %v2624 = vsub.s32 %v2304, %v2623
    %v2625 = vrot.slane %v1926, %v2624
    %v2626 = vsel %vm2309, %v2625, %v2621
    %v2627 = vlaneseq
    %v2628 = vshrl.u32 %v2627, 7
    %v2629 = vsub.s32 %v2072, %v2628
    %v2630 = vrot.slane %v1929, %v2629
    %v2631 = vlaneseq
    %v2632 = vshrl.u32 %v2631, 7
    %v2633 = vsub.s32 %v2206, %v2632
    %v2634 = vrot.slane %v1932, %v2633
    %v2635 = vsel %vm2211, %v2634, %v2630
    %v2636 = vlaneseq
    %v2637 = vshrl.u32 %v2636, 7
    %v2638 = vsub.s32 %v2213, %v2637
    %v2639 = vrot.slane %v1935, %v2638
    %v2640 = vsel %vm2218, %v2639, %v2635
    %v2641 = vlaneseq
    %v2642 = vshrl.u32 %v2641, 7
    %v2643 = vsub.s32 %v2220, %v2642
    %v2644 = vrot.slane %v1938, %v2643
    %v2645 = vsel %vm2225, %v2644, %v2640
    %v2646 = vlaneseq
    %v2647 = vshrl.u32 %v2646, 7
    %v2648 = vsub.s32 %v2227, %v2647
    %v2649 = vrot.slane %v1941, %v2648
    %v2650 = vsel %vm2232, %v2649, %v2645
    %v2651 = vlaneseq
    %v2652 = vshrl.u32 %v2651, 7
    %v2653 = vsub.s32 %v2234, %v2652
    %v2654 = vrot.slane %v1944, %v2653
    %v2655 = vsel %vm2239, %v2654, %v2650
    %v2656 = vlaneseq
    %v2657 = vshrl.u32 %v2656, 7
    %v2658 = vsub.s32 %v2241, %v2657
    %v2659 = vrot.slane %v1947, %v2658
    %v2660 = vsel %vm2246, %v2659, %v2655
    %v2661 = vlaneseq
    %v2662 = vshrl.u32 %v2661, 7
    %v2663 = vsub.s32 %v2248, %v2662
    %v2664 = vrot.slane %v1950, %v2663
    %v2665 = vsel %vm2253, %v2664, %v2660
    %v2666 = vlaneseq
    %v2667 = vshrl.u32 %v2666, 7
    %v2668 = vsub.s32 %v2255, %v2667
    %v2669 = vrot.slane %v1953, %v2668
    %v2670 = vsel %vm2260, %v2669, %v2665
    %v2671 = vlaneseq
    %v2672 = vshrl.u32 %v2671, 7
    %v2673 = vsub.s32 %v2262, %v2672
    %v2674 = vrot.slane %v1956, %v2673
    %v2675 = vsel %vm2267, %v2674, %v2670
    %v2676 = vlaneseq
    %v2677 = vshrl.u32 %v2676, 7
    %v2678 = vsub.s32 %v2269, %v2677
    %v2679 = vrot.slane %v1959, %v2678
    %v2680 = vsel %vm2274, %v2679, %v2675
    %v2681 = vlaneseq
    %v2682 = vshrl.u32 %v2681, 7
    %v2683 = vsub.s32 %v2276, %v2682
    %v2684 = vrot.slane %v1962, %v2683
    %v2685 = vsel %vm2281, %v2684, %v2680
    %v2686 = vlaneseq
    %v2687 = vshrl.u32 %v2686, 7
    %v2688 = vsub.s32 %v2283, %v2687
    %v2689 = vrot.slane %v1965, %v2688
    %v2690 = vsel %vm2288, %v2689, %v2685
    %v2691 = vlaneseq
    %v2692 = vshrl.u32 %v2691, 7
    %v2693 = vsub.s32 %v2290, %v2692
    %v2694 = vrot.slane %v1968, %v2693
    %v2695 = vsel %vm2295, %v2694, %v2690
    %v2696 = vlaneseq
    %v2697 = vshrl.u32 %v2696, 7
    %v2698 = vsub.s32 %v2297, %v2697
    %v2699 = vrot.slane %v1971, %v2698
    %v2700 = vsel %vm2302, %v2699, %v2695
    %v2701 = vlaneseq
    %v2702 = vshrl.u32 %v2701, 7
    %v2703 = vsub.s32 %v2304, %v2702
    %v2704 = vrot.slane %v1974, %v2703
    %v2705 = vsel %vm2309, %v2704, %v2700
    %v2706 = vlaneseq
    %v2707 = vshrl.u32 %v2706, 7
    %v2708 = vsub.s32 %v2072, %v2707
    %v2709 = vrot.slane %v1977, %v2708
    %v2710 = vlaneseq
    %v2711 = vshrl.u32 %v2710, 7
    %v2712 = vsub.s32 %v2206, %v2711
    %v2713 = vrot.slane %v1980, %v2712
    %v2714 = vsel %vm2211, %v2713, %v2709
    %v2715 = vlaneseq
    %v2716 = vshrl.u32 %v2715, 7
    %v2717 = vsub.s32 %v2213, %v2716
    %v2718 = vrot.slane %v1983, %v2717
    %v2719 = vsel %vm2218, %v2718, %v2714
    %v2720 = vlaneseq
    %v2721 = vshrl.u32 %v2720, 7
    %v2722 = vsub.s32 %v2220, %v2721
    %v2723 = vrot.slane %v1986, %v2722
    %v2724 = vsel %vm2225, %v2723, %v2719
    %v2725 = vlaneseq
    %v2726 = vshrl.u32 %v2725, 7
    %v2727 = vsub.s32 %v2227, %v2726
    %v2728 = vrot.slane %v1989, %v2727
    %v2729 = vsel %vm2232, %v2728, %v2724
    %v2730 = vlaneseq
    %v2731 = vshrl.u32 %v2730, 7
    %v2732 = vsub.s32 %v2234, %v2731
    %v2733 = vrot.slane %v1992, %v2732
    %v2734 = vsel %vm2239, %v2733, %v2729
    %v2735 = vlaneseq
    %v2736 = vshrl.u32 %v2735, 7
    %v2737 = vsub.s32 %v2241, %v2736
    %v2738 = vrot.slane %v1995, %v2737
    %v2739 = vsel %vm2246, %v2738, %v2734
    %v2740 = vlaneseq
    %v2741 = vshrl.u32 %v2740, 7
    %v2742 = vsub.s32 %v2248, %v2741
    %v2743 = vrot.slane %v1998, %v2742
    %v2744 = vsel %vm2253, %v2743, %v2739
    %v2745 = vlaneseq
    %v2746 = vshrl.u32 %v2745, 7
    %v2747 = vsub.s32 %v2255, %v2746
    %v2748 = vrot.slane %v2001, %v2747
    %v2749 = vsel %vm2260, %v2748, %v2744
    %v2750 = vlaneseq
    %v2751 = vshrl.u32 %v2750, 7
    %v2752 = vsub.s32 %v2262, %v2751
    %v2753 = vrot.slane %v2004, %v2752
    %v2754 = vsel %vm2267, %v2753, %v2749
    %v2755 = vlaneseq
    %v2756 = vshrl.u32 %v2755, 7
    %v2757 = vsub.s32 %v2269, %v2756
    %v2758 = vrot.slane %v2007, %v2757
    %v2759 = vsel %vm2274, %v2758, %v2754
    %v2760 = vlaneseq
    %v2761 = vshrl.u32 %v2760, 7
    %v2762 = vsub.s32 %v2276, %v2761
    %v2763 = vrot.slane %v2010, %v2762
    %v2764 = vsel %vm2281, %v2763, %v2759
    %v2765 = vlaneseq
    %v2766 = vshrl.u32 %v2765, 7
    %v2767 = vsub.s32 %v2283, %v2766
    %v2768 = vrot.slane %v2013, %v2767
    %v2769 = vsel %vm2288, %v2768, %v2764
    %v2770 = vlaneseq
    %v2771 = vshrl.u32 %v2770, 7
    %v2772 = vsub.s32 %v2290, %v2771
    %v2773 = vrot.slane %v2016, %v2772
    %v2774 = vsel %vm2295, %v2773, %v2769
    %v2775 = vlaneseq
    %v2776 = vshrl.u32 %v2775, 7
    %v2777 = vsub.s32 %v2297, %v2776
    %v2778 = vrot.slane %v2019, %v2777
    %v2779 = vsel %vm2302, %v2778, %v2774
    %v2780 = vlaneseq
    %v2781 = vshrl.u32 %v2780, 7
    %v2782 = vsub.s32 %v2304, %v2781
    %v2783 = vrot.slane %v2022, %v2782
    %v2784 = vsel %vm2309, %v2783, %v2779
    %v2785 = vlaneseq
    %v2786 = vshrl.u32 %v2785, 7
    %v2787 = vsub.s32 %v2072, %v2786
    %v2788 = vrot.slane %v2025, %v2787
    %v2789 = vlaneseq
    %v2790 = vshrl.u32 %v2789, 7
    %v2791 = vsub.s32 %v2206, %v2790
    %v2792 = vrot.slane %v2028, %v2791
    %v2793 = vsel %vm2211, %v2792, %v2788
    %v2794 = vlaneseq
    %v2795 = vshrl.u32 %v2794, 7
    %v2796 = vsub.s32 %v2213, %v2795
    %v2797 = vrot.slane %v2031, %v2796
    %v2798 = vsel %vm2218, %v2797, %v2793
    %v2799 = vlaneseq
    %v2800 = vshrl.u32 %v2799, 7
    %v2801 = vsub.s32 %v2220, %v2800
    %v2802 = vrot.slane %v2034, %v2801
    %v2803 = vsel %vm2225, %v2802, %v2798
    %v2804 = vlaneseq
    %v2805 = vshrl.u32 %v2804, 7
    %v2806 = vsub.s32 %v2227, %v2805
    %v2807 = vrot.slane %v2037, %v2806
    %v2808 = vsel %vm2232, %v2807, %v2803
    %v2809 = vlaneseq
    %v2810 = vshrl.u32 %v2809, 7
    %v2811 = vsub.s32 %v2234, %v2810
    %v2812 = vrot.slane %v2040, %v2811
    %v2813 = vsel %vm2239, %v2812, %v2808
    %v2814 = vlaneseq
    %v2815 = vshrl.u32 %v2814, 7
    %v2816 = vsub.s32 %v2241, %v2815
    %v2817 = vrot.slane %v2043, %v2816
    %v2818 = vsel %vm2246, %v2817, %v2813
    %v2819 = vlaneseq
    %v2820 = vshrl.u32 %v2819, 7
    %v2821 = vsub.s32 %v2248, %v2820
    %v2822 = vrot.slane %v2046, %v2821
    %v2823 = vsel %vm2253, %v2822, %v2818
    %v2824 = vlaneseq
    %v2825 = vshrl.u32 %v2824, 7
    %v2826 = vsub.s32 %v2255, %v2825
    %v2827 = vrot.slane %v2049, %v2826
    %v2828 = vsel %vm2260, %v2827, %v2823
    %v2829 = vlaneseq
    %v2830 = vshrl.u32 %v2829, 7
    %v2831 = vsub.s32 %v2262, %v2830
    %v2832 = vrot.slane %v2052, %v2831
    %v2833 = vsel %vm2267, %v2832, %v2828
    %v2834 = vlaneseq
    %v2835 = vshrl.u32 %v2834, 7
    %v2836 = vsub.s32 %v2269, %v2835
    %v2837 = vrot.slane %v2055, %v2836
    %v2838 = vsel %vm2274, %v2837, %v2833
    %v2839 = vlaneseq
    %v2840 = vshrl.u32 %v2839, 7
    %v2841 = vsub.s32 %v2276, %v2840
    %v2842 = vrot.slane %v2058, %v2841
    %v2843 = vsel %vm2281, %v2842, %v2838
    %v2844 = vlaneseq
    %v2845 = vshrl.u32 %v2844, 7
    %v2846 = vsub.s32 %v2283, %v2845
    %v2847 = vrot.slane %v2061, %v2846
    %v2848 = vsel %vm2288, %v2847, %v2843
    %v2849 = vlaneseq
    %v2850 = vshrl.u32 %v2849, 7
    %v2851 = vsub.s32 %v2290, %v2850
    %v2852 = vrot.slane %v2064, %v2851
    %v2853 = vsel %vm2295, %v2852, %v2848
    %v2854 = vlaneseq
    %v2855 = vshrl.u32 %v2854, 7
    %v2856 = vsub.s32 %v2297, %v2855
    %v2857 = vrot.slane %v2067, %v2856
    %v2858 = vsel %vm2302, %v2857, %v2853
    %v2859 = vlaneseq
    %v2860 = vshrl.u32 %v2859, 7
    %v2861 = vsub.s32 %v2304, %v2860
    %v2862 = vrot.slane %v2070, %v2861
    %v2863 = vsel %vm2309, %v2862, %v2858
    %vm2864 = vcmask 1041409
    %v2865 = vsel %vm2864, %v2389, %v2310
    %vm2866 = vcmask 1042434
    %v2867 = vsel %vm2866, %v2468, %v2865
    %vm2868 = vcmask 1043459
    %v2869 = vsel %vm2868, %v2547, %v2867
    %vm2870 = vcmask 1044484
    %v2871 = vsel %vm2870, %v2626, %v2869
    %vm2872 = vcmask 1045509
    %v2873 = vsel %vm2872, %v2705, %v2871
    %vm2874 = vcmask 1046534
    %v2875 = vsel %vm2874, %v2784, %v2873
    %vm2876 = vcmask 1047559
    %v2877 = vsel %vm2876, %v2863, %v2875
    %v2879 = vsel %vm2073, %v2877, -inf
    %2880 = vmax.xlane.f32.xlu0 %v2879
    %v2881 = vpop.xlane.xlu0 %2880
    %v2882 = vsub.f32 %v2879, %v2881
    %v2883 = vmul.f32 %v2882, 1.442695
    %v2884 = vpow.pop %v2883
    %2885 = vadd.xlane.f32.xlu0 %v2884
    %v2886 = vpop.xlane.xlu0 %2885
    %v2887 = vrcp.pop %v2886
    %v2888 = vmul.f32 %v2884, %v2887
    %2889 = vst [vmem:[#allocation2] sm:$0xff] %v2888
    // Predicated region
    $region18: #{tpu_custom_call.1} parent=1 // pred_check
      _
    $region19: #{tpu_custom_call.1} parent=1 // pred_check_branch
      %2891 = sbr.rel (0) target = $region21
    $region20: #{tpu_custom_call.1} parent=1 // pred_region
      %s2893 = ssub.s32 128, 128
      %2894 = vsyncadd [#allocation3], %s2893
      %s2896 = sshll.u32 [#allocation2], 4
      %s2897 = int_to_ptr.vmem [resolvable:$true] %s2896
      %2899 = dma.vmem_to_hbm [thread:$0]  %s2897, 128, %s4, [#allocation3]
    $region21: #{tpu_custom_call.1} parent=1 // pred_fallthru
      _
    // Predicated region
    $region22: #{tpu_custom_call.1} parent=1 // pred_check
      _
    $region23: #{tpu_custom_call.1} parent=1 // pred_check_branch
      %2901 = sbr.rel (0) target = $region25
    $region24: #{tpu_custom_call.1} parent=1 // pred_region
      %2902 = dma.done [#allocation3], 128
    $region25: #{tpu_custom_call.1} parent=1 // pred_fallthru
      _
    %2903 = vsyncpa [#allocation3], 1

</llo_original>
